<compile_context>
chip_gen: v7x
topology: tpu7x:2x2x1
jax: 0.10.0
libtpu: 0.0.40
codegen_flags: <defaults>
</compile_context>

<pallas_src>
import jax
import jax.numpy as jnp
import numpy as np
from jax import lax
from jax.experimental import pallas as pl
from jax.experimental.pallas import tpu as pltpu

LRP_EPS = 1e-2      # 'e' of the LRP epsilon rule
BN_EPS = 1e-5       # BatchNorm running-stats epsilon


# --------------------------- wrapper-side helpers ---------------------------

def _banded_backward_weights(w_hwio, W):
    """Fold the transposed 3x3 conv's W-axis structure into weight matrices.

    Returns B of shape (3, W*Cout, W*Cin) (bf16) such that, with S the
    (H+2, W*Cout) row-zero-padded flattened s tensor,

        c[h, w*Cin + ci] = sum_kh  S[h + kh, :] @ B[kh]

    equals conv_transpose(s, w_hwio) with SAME padding (the LRP "c" term).
    SAME padding along W is absorbed by the band structure, so the kernel
    needs no W padding and no im2col copies.
    """
    KH, KW, Cin, Cout = w_hwio.shape
    # backward ("flipped + channel-transposed") weight:
    #   wb[kh, kw, co, ci] = w[KH-1-kh, KW-1-kw, ci, co]
    wb = jnp.transpose(w_hwio[::-1, ::-1], (0, 1, 3, 2)).astype(jnp.float32)
    # sel[kw, ws, w] = 1  iff  source column ws == w + kw - 1  (SAME padding)
    sel = np.zeros((KW, W, W), np.float32)
    for kw in range(KW):
        for w in range(W):
            ws = w + kw - 1
            if 0 <= ws < W:
                sel[kw, ws, w] = 1.0
    band = jnp.einsum("kst,hkoc->hsotc", jnp.asarray(sel), wb)
    return band.reshape(KH, W * Cout, W * Cin).astype(jnp.bfloat16)


def _folded_bn_scale(gamma, var, W):
    """gamma/sqrt(var+eps), tiled over W to match the (H, W*C) lane layout."""
    scale = (gamma / jnp.sqrt(var + BN_EPS)).astype(jnp.float32)
    return jnp.tile(scale, W).reshape(1, W * gamma.shape[0])


# --------------------------------- kernel -----------------------------------

def _lrp_conv_block_kernel(rk_ref,
                           aj3_ref, akc3_ref, ak3_ref,
                           aj2_ref, akc2_ref, ak2_ref,
                           aj1_ref, akc1_ref, ak1_ref,
                           b3_ref, b2_ref, b1_ref,
                           sc3_ref, sc2_ref, sc1_ref,
                           rj_ref, spad_ref):
    """Fused LRP backward pass conv3 -> conv2 -> conv1 for one batch element.

    Activations are laid out (1, H, W*C): the lane axis is W*C (lane-dense).
    spad_ref is a (H+2, W*Cout) bf16 scratch holding the row-zero-padded `s`.
    """
    H = rk_ref.shape[1]
    WC = rk_ref.shape[2]

    # Zero only the 1-row top/bottom halo; the interior is fully overwritten
    # by every layer.  Done every grid step (cheap: 2 rows) so it stays
    # correct when the batch grid is sharded across TensorCores, each of
    # which owns its own scratch instance.
    zero_row = jnp.zeros((1, WC), spad_ref.dtype)
    spad_ref[pl.ds(0, 1), :] = zero_row
    spad_ref[pl.ds(H + 1, 1), :] = zero_row

    def stab(z):
        return z + LRP_EPS * jnp.where(z >= 0, 1.0, -1.0).astype(z.dtype)

    def lrp_step(rk, aj, akconv, ak, scale, b_ref):
        # BN ratio rule + conv epsilon rule, merged into a single divide:
        #   s = rk * aKConv * scale / (stab(aK) * stab(aKConv))
        s = (rk * akconv * scale) / (stab(ak) * stab(akconv))
        # Write s into the interior rows of the zero-row-padded scratch
        # (bf16 MXU operand; lane layout already matches the banded weights).
        spad_ref[pl.ds(1, H), :] = s.astype(spad_ref.dtype)
        # Transposed 3x3 conv == 3 MXU matmuls (one per kernel row) against
        # the banded weight matrices, f32 accumulation.
        n_out = b_ref.shape[2]
        acc = jnp.zeros((H, n_out), jnp.float32)
        for kh in range(3):
            acc += jnp.dot(spad_ref[pl.ds(kh, H), :], b_ref[kh],
                           preferred_element_type=jnp.float32)
        return aj * acc

    r = rk_ref[0]
    r = lrp_step(r, aj3_ref[0], akc3_ref[0], ak3_ref[0], sc3_ref[...], b3_ref)
    r = lrp_step(r, aj2_ref[0], akc2_ref[0], ak2_ref[0], sc2_ref[...], b2_ref)
    r = lrp_step(r, aj1_ref[0], akc1_ref[0], ak1_ref[0], sc1_ref[...], b1_ref)
    rj_ref[0] = r.astype(rj_ref.dtype)


# -------------------------------- wrapper ------------------------------------

def lrp_conv_block(r, X, params):
    """Mirrors LRPConvBlock.forward for a 3-conv, non-first block (NHWC).

    r       : (N, H, W, C) relevance at the block output.
    X       : dict of recorded forward activations (NHWC).
    params  : conv weights (HWIO) and BN gamma / running-var per layer.
    Returns : (N, H, W, Cin) relevance at the block input.
    """
    N, H, W, C = r.shape
    Cin = X["block_in"].shape[-1]
    WC, WCin = W * C, W * Cin

    def flat(a):
        return a.reshape(N, H, a.shape[2] * a.shape[3]).astype(jnp.float32)

    b3 = _banded_backward_weights(params["w3"], W)
    b2 = _banded_backward_weights(params["w2"], W)
    b1 = _banded_backward_weights(params["w1"], W)
    sc3 = _folded_bn_scale(params["gamma3"], params["var3"], W)
    sc2 = _folded_bn_scale(params["gamma2"], params["var2"], W)
    sc1 = _folded_bn_scale(params["gamma1"], params["var1"], W)

    inputs = (flat(r),
              flat(X["relu2"]), flat(X["conv3"]), flat(X["bn3"]),
              flat(X["relu1"]), flat(X["conv2"]), flat(X["bn2"]),
              flat(X["block_in"]), flat(X["conv1"]), flat(X["bn1"]),
              b3, b2, b1, sc3, sc2, sc1)

    act_c = pl.BlockSpec((1, H, WC), lambda n: (n, 0, 0))
    act_in = pl.BlockSpec((1, H, WCin), lambda n: (n, 0, 0))
    wgt = lambda a: pl.BlockSpec(a.shape, lambda n: (0, 0, 0))
    scl = pl.BlockSpec((1, WC), lambda n: (0, 0))

    in_specs = [act_c,                    # rk
                act_c, act_c, act_c,      # layer 3: aJ, aKConv, aK
                act_c, act_c, act_c,      # layer 2: aJ, aKConv, aK
                act_in, act_c, act_c,     # layer 1: aJ (Cin channels), aKConv, aK
                wgt(b3), wgt(b2), wgt(b1),
                scl, scl, scl]

    # Advisory cost estimate for the XLA scheduler around this custom call.
    mm_flops = N * 6 * H * WC * (WC + WC + WCin)          # 3 layers x 3 matmuls
    ew_flops = N * 3 * 8 * H * WC                         # elementwise LRP math
    bytes_accessed = sum(int(a.size) * a.dtype.itemsize for a in inputs)
    bytes_accessed += N * H * WCin * 4                    # output
    cost = pl.CostEstimate(flops=mm_flops + ew_flops,
                           transcendentals=N * 3 * H * WC,
                           bytes_accessed=bytes_accessed)

    out = pl.pallas_call(
        _lrp_conv_block_kernel,
        out_shape=jax.ShapeDtypeStruct((N, H, WCin), jnp.float32),
        grid_spec=pltpu.PrefetchScalarGridSpec(
            num_scalar_prefetch=0,
            grid=(N,),
            in_specs=in_specs,
            out_specs=pl.BlockSpec((1, H, WCin), lambda n: (n, 0, 0)),
            scratch_shapes=[pltpu.VMEM((H + 2, WC), jnp.bfloat16)],
        ),
        compiler_params=pltpu.CompilerParams(
            dimension_semantics=("parallel",),
            vmem_limit_bytes=32 * 1024 * 1024,
        ),
        cost_estimate=cost,
    )(*inputs)

    # TODO(synk): first=True path (LRP.ZbRuleConvBNInput z^B rule on the raw
    # image input) is not implemented; only the LRPConvBNReLU epsilon path is.
    return out.reshape(N, H, W, Cin)


# ----------------------- glue: forward pass & reference -----------------------

def _conv2d(x, w):
    return lax.conv_general_dilated(
        x, w, window_strides=(1, 1), padding="SAME",
        dimension_numbers=("NHWC", "HWIO", "NHWC"))


def _bn(x, gamma, beta, mean, var):
    return gamma * (x - mean) / jnp.sqrt(var + BN_EPS) + beta


def _lrp_step_ref(rk, aj, akconv, ak, w_hwio, gamma, var):
    """Pure-JAX f32 reference of one LRPConvBNReLU step (for validation)."""
    scale = gamma / jnp.sqrt(var + BN_EPS)
    stab = lambda z: z + LRP_EPS * jnp.where(z >= 0, 1.0, -1.0)
    r_conv = rk * (akconv * scale) / stab(ak)
    s = r_conv / stab(akconv)
    f = lambda a: lax.conv_general_dilated(
        a, w_hwio, (1, 1), "SAME",
        dimension_numbers=("NHWC", "HWIO", "NHWC"),
        precision=lax.Precision.HIGHEST)
    _, vjp = jax.vjp(f, aj)
    (c,) = vjp(s)
    return aj * c


if __name__ == "__main__":
    key = jax.random.PRNGKey(0)
    N, H, W = 2, 16, 16
    C_in, C = 4, 8   # block input channels -> block feature channels

    ks = jax.random.split(key, 8)

    # PyTorch-style NCHW input, transposed to NHWC for the kernel layout.
    x_nchw = jax.random.normal(ks[0], (N, C_in, H, W), jnp.float32)
    x = jnp.maximum(jnp.transpose(x_nchw, (0, 2, 3, 1)), 0.0)  # non-neg acts

    def init_conv(k, cin, cout):
        return 0.3 * jax.random.normal(k, (3, 3, cin, cout), jnp.float32)

    def init_bn(k, c):
        k1, k2, k3, k4 = jax.random.split(k, 4)
        gamma = 0.5 + jax.random.uniform(k1, (c,), jnp.float32)
        beta = 0.1 * jax.random.normal(k2, (c,), jnp.float32)
        mean = 0.1 * jax.random.normal(k3, (c,), jnp.float32)
        var = 0.5 + jax.random.uniform(k4, (c,), jnp.float32)
        return gamma, beta, mean, var

    w1 = init_conv(ks[1], C_in, C)
    w2 = init_conv(ks[2], C, C)
    w3 = init_conv(ks[3], C, C)
    g1, b1, m1, v1 = init_bn(ks[4], C)
    g2, b2, m2, v2 = init_bn(ks[5], C)
    g3, b3, m3, v3 = init_bn(ks[6], C)

    # Forward pass of the conv block (conv->BN->ReLU x3), recording the
    # activations the LRP backward pass consumes.
    c1 = _conv2d(x, w1); bn1 = _bn(c1, g1, b1, m1, v1); a1 = jnp.maximum(bn1, 0.)
    c2 = _conv2d(a1, w2); bn2 = _bn(c2, g2, b2, m2, v2); a2 = jnp.maximum(bn2, 0.)
    c3 = _conv2d(a2, w3); bn3 = _bn(c3, g3, b3, m3, v3); a3 = jnp.maximum(bn3, 0.)

    X = {"block_in": x, "conv1": c1, "bn1": bn1, "relu1": a1,
         "conv2": c2, "bn2": bn2, "relu2": a2,
         "conv3": c3, "bn3": bn3, "relu3": a3}
    params = {"w1": w1, "gamma1": g1, "var1": v1,
              "w2": w2, "gamma2": g2, "var2": v2,
              "w3": w3, "gamma3": g3, "var3": v3}

    r0 = a3  # relevance entering this block from the layer above

    r = lrp_conv_block(r0, X, params)
    r = jax.block_until_ready(r)

    # Validate against a pure-JAX f32 reference of the same three LRP steps.
    rr = _lrp_step_ref(r0, a2, c3, bn3, w3, g3, v3)
    rr = _lrp_step_ref(rr, a1, c2, bn2, w2, g2, v2)
    rr = _lrp_step_ref(rr, x, c1, bn1, w1, g1, v1)

    err = float(jnp.max(jnp.abs(r - rr)))
    ref_scale = float(jnp.max(jnp.abs(rr))) + 1e-6
    # Tolerance accounts for bf16 MXU operands (with f32 accumulation) across
    # three chained LRP layers; elementwise math is f32 throughout and the
    # observed error sits well below this bound.
    assert err / ref_scale < 2e-2, f"mismatch: rel_err={err / ref_scale}"
    print("KERNEL_OK")
</pallas_src>

<mosaic_0001>
module attributes {stable_mosaic.version = 11 : i64} {
  func.func @_lrp_conv_block_kernel(%arg0: i32, %arg1: memref<1x16x128xf32, #tpu.memory_space<vmem>>, %arg2: memref<1x16x128xf32, #tpu.memory_space<vmem>>, %arg3: memref<1x16x128xf32, #tpu.memory_space<vmem>>, %arg4: memref<1x16x128xf32, #tpu.memory_space<vmem>>, %arg5: memref<1x16x128xf32, #tpu.memory_space<vmem>>, %arg6: memref<1x16x128xf32, #tpu.memory_space<vmem>>, %arg7: memref<1x16x128xf32, #tpu.memory_space<vmem>>, %arg8: memref<1x16x64xf32, #tpu.memory_space<vmem>>, %arg9: memref<1x16x128xf32, #tpu.memory_space<vmem>>, %arg10: memref<1x16x128xf32, #tpu.memory_space<vmem>>, %arg11: memref<3x128x128xbf16, #tpu.memory_space<vmem>>, %arg12: memref<3x128x128xbf16, #tpu.memory_space<vmem>>, %arg13: memref<3x128x64xbf16, #tpu.memory_space<vmem>>, %arg14: memref<1x128xf32, #tpu.memory_space<vmem>>, %arg15: memref<1x128xf32, #tpu.memory_space<vmem>>, %arg16: memref<1x128xf32, #tpu.memory_space<vmem>>, %arg17: memref<1x16x64xf32, #tpu.memory_space<vmem>>, %arg18: memref<18x128xbf16, #tpu.memory_space<vmem>>) attributes {dimension_semantics = [#tpu.dimension_semantics<parallel>], iteration_bounds = array<i64: 2>, scalar_prefetch = 0 : i64, scratch_operands = 1 : i64, tpu.core_type = #tpu.core_type<tc>, window_params = [{transform_indices = @transform_0, window_bounds = array<i64: 1, 16, 128>}, {transform_indices = @transform_1, window_bounds = array<i64: 1, 16, 128>}, {transform_indices = @transform_2, window_bounds = array<i64: 1, 16, 128>}, {transform_indices = @transform_3, window_bounds = array<i64: 1, 16, 128>}, {transform_indices = @transform_4, window_bounds = array<i64: 1, 16, 128>}, {transform_indices = @transform_5, window_bounds = array<i64: 1, 16, 128>}, {transform_indices = @transform_6, window_bounds = array<i64: 1, 16, 128>}, {transform_indices = @transform_7, window_bounds = array<i64: 1, 16, 64>}, {transform_indices = @transform_8, window_bounds = array<i64: 1, 16, 128>}, {transform_indices = @transform_9, window_bounds = array<i64: 1, 16, 128>}, {pipeline_mode = #tpu.pipeline_mode<synchronous>, transform_indices = @transform_10, window_bounds = array<i64: 3, 128, 128>}, {pipeline_mode = #tpu.pipeline_mode<synchronous>, transform_indices = @transform_11, window_bounds = array<i64: 3, 128, 128>}, {pipeline_mode = #tpu.pipeline_mode<synchronous>, transform_indices = @transform_12, window_bounds = array<i64: 3, 128, 64>}, {pipeline_mode = #tpu.pipeline_mode<synchronous>, transform_indices = @transform_13, window_bounds = array<i64: 1, 128>}, {pipeline_mode = #tpu.pipeline_mode<synchronous>, transform_indices = @transform_14, window_bounds = array<i64: 1, 128>}, {pipeline_mode = #tpu.pipeline_mode<synchronous>, transform_indices = @transform_15, window_bounds = array<i64: 1, 128>}, {transform_indices = @transform_16, window_bounds = array<i64: 1, 16, 64>}]} {
    %cst = arith.constant 0.000000e+00 : bf16
    %0 = vector.broadcast %cst : bf16 to vector<1x128xbf16>
    %c0 = arith.constant 0 : index
    %c0_0 = arith.constant 0 : index
    %1 = vector.load %arg18[%c0, %c0_0] : memref<18x128xbf16, #tpu.memory_space<vmem>>, vector<1x128xbf16>
    tpu.vector_store %arg18[%c0, %c0_0], %0 {strides = array<i32>} : memref<18x128xbf16, #tpu.memory_space<vmem>>, vector<1x128xbf16>,
    %c17 = arith.constant 17 : index
    %c0_1 = arith.constant 0 : index
    %2 = vector.load %arg18[%c17, %c0_1] : memref<18x128xbf16, #tpu.memory_space<vmem>>, vector<1x128xbf16>
    tpu.vector_store %arg18[%c17, %c0_1], %0 {strides = array<i32>} : memref<18x128xbf16, #tpu.memory_space<vmem>>, vector<1x128xbf16>,
    %c0_2 = arith.constant 0 : index
    %c0_3 = arith.constant 0 : index
    %c0_4 = arith.constant 0 : index
    %3 = vector.load %arg1[%c0_2, %c0_3, %c0_4] : memref<1x16x128xf32, #tpu.memory_space<vmem>>, vector<1x16x128xf32>
    %4 = vector.shape_cast %3 : vector<1x16x128xf32> to vector<16x128xf32>
    %c0_5 = arith.constant 0 : index
    %c0_6 = arith.constant 0 : index
    %c0_7 = arith.constant 0 : index
    %5 = vector.load %arg2[%c0_5, %c0_6, %c0_7] : memref<1x16x128xf32, #tpu.memory_space<vmem>>, vector<1x16x128xf32>
    %6 = vector.shape_cast %5 : vector<1x16x128xf32> to vector<16x128xf32>
    %c0_8 = arith.constant 0 : index
    %c0_9 = arith.constant 0 : index
    %c0_10 = arith.constant 0 : index
    %7 = vector.load %arg3[%c0_8, %c0_9, %c0_10] : memref<1x16x128xf32, #tpu.memory_space<vmem>>, vector<1x16x128xf32>
    %8 = vector.shape_cast %7 : vector<1x16x128xf32> to vector<16x128xf32>
    %c0_11 = arith.constant 0 : index
    %c0_12 = arith.constant 0 : index
    %c0_13 = arith.constant 0 : index
    %9 = vector.load %arg4[%c0_11, %c0_12, %c0_13] : memref<1x16x128xf32, #tpu.memory_space<vmem>>, vector<1x16x128xf32>
    %10 = vector.shape_cast %9 : vector<1x16x128xf32> to vector<16x128xf32>
    %c0_14 = arith.constant 0 : index
    %c0_15 = arith.constant 0 : index
    %11 = vector.load %arg14[%c0_14, %c0_15] : memref<1x128xf32, #tpu.memory_space<vmem>>, vector<1x128xf32>
    %12 = arith.mulf %4, %8 : vector<16x128xf32>
    %13 = vector.broadcast %11 : vector<1x128xf32> to vector<16x128xf32>
    %14 = arith.mulf %12, %13 : vector<16x128xf32>
    %cst_16 = arith.constant 0.000000e+00 : f32
    %15 = vector.broadcast %cst_16 : f32 to vector<16x128xf32>
    %16 = arith.cmpf oge, %10, %15 : vector<16x128xf32>
    %cst_17 = arith.constant 1.000000e+00 : f32
    %cst_18 = arith.constant -1.000000e+00 : f32
    %17 = vector.broadcast %cst_17 : f32 to vector<16x128xf32>
    %18 = vector.broadcast %cst_18 : f32 to vector<16x128xf32>
    %19 = arith.select %16, %17, %18 : vector<16x128xi1>, vector<16x128xf32>
    %cst_19 = arith.constant 0.00999999977 : f32
    %20 = vector.broadcast %cst_19 : f32 to vector<16x128xf32>
    %21 = arith.mulf %20, %19 : vector<16x128xf32>
    %22 = arith.addf %10, %21 : vector<16x128xf32>
    %cst_20 = arith.constant 0.000000e+00 : f32
    %23 = vector.broadcast %cst_20 : f32 to vector<16x128xf32>
    %24 = arith.cmpf oge, %8, %23 : vector<16x128xf32>
    %cst_21 = arith.constant 1.000000e+00 : f32
    %cst_22 = arith.constant -1.000000e+00 : f32
    %25 = vector.broadcast %cst_21 : f32 to vector<16x128xf32>
    %26 = vector.broadcast %cst_22 : f32 to vector<16x128xf32>
    %27 = arith.select %24, %25, %26 : vector<16x128xi1>, vector<16x128xf32>
    %cst_23 = arith.constant 0.00999999977 : f32
    %28 = vector.broadcast %cst_23 : f32 to vector<16x128xf32>
    %29 = arith.mulf %28, %27 : vector<16x128xf32>
    %30 = arith.addf %8, %29 : vector<16x128xf32>
    %31 = arith.mulf %22, %30 : vector<16x128xf32>
    %32 = arith.divf %14, %31 : vector<16x128xf32>
    %33 = arith.truncf %32 : vector<16x128xf32> to vector<16x128xbf16>
    %c1 = arith.constant 1 : index
    %c0_24 = arith.constant 0 : index
    %34 = vector.load %arg18[%c1, %c0_24] : memref<18x128xbf16, #tpu.memory_space<vmem>>, vector<16x128xbf16>
    tpu.vector_store %arg18[%c1, %c0_24], %33 {strides = array<i32>} : memref<18x128xbf16, #tpu.memory_space<vmem>>, vector<16x128xbf16>,
    %cst_25 = arith.constant 0.000000e+00 : f32
    %35 = vector.broadcast %cst_25 : f32 to vector<16x128xf32>
    %c0_26 = arith.constant 0 : index
    %c0_27 = arith.constant 0 : index
    %36 = vector.load %arg18[%c0_26, %c0_27] : memref<18x128xbf16, #tpu.memory_space<vmem>>, vector<16x128xbf16>
    %c0_28 = arith.constant 0 : index
    %c0_29 = arith.constant 0 : index
    %c0_30 = arith.constant 0 : index
    %37 = vector.load %arg11[%c0_28, %c0_29, %c0_30] : memref<3x128x128xbf16, #tpu.memory_space<vmem>>, vector<1x128x128xbf16>
    %38 = vector.shape_cast %37 : vector<1x128x128xbf16> to vector<128x128xbf16>
    %cst_31 = arith.constant dense<0.000000e+00> : vector<16x128xf32>
    %39 = tpu.matmul %36, %38, %cst_31 {dimension_numbers = #tpu.dot_dimension_numbers<[1], [0], [0], [1], [0, 0, 1, 1], [], []>} : vector<16x128xbf16>, vector<128x128xbf16>, vector<16x128xf32> -> vector<16x128xf32>
    %40 = arith.addf %35, %39 : vector<16x128xf32>
    %c1_32 = arith.constant 1 : index
    %c0_33 = arith.constant 0 : index
    %41 = vector.load %arg18[%c1_32, %c0_33] : memref<18x128xbf16, #tpu.memory_space<vmem>>, vector<16x128xbf16>
    %c1_34 = arith.constant 1 : index
    %c0_35 = arith.constant 0 : index
    %c0_36 = arith.constant 0 : index
    %42 = vector.load %arg11[%c1_34, %c0_35, %c0_36] : memref<3x128x128xbf16, #tpu.memory_space<vmem>>, vector<1x128x128xbf16>
    %43 = vector.shape_cast %42 : vector<1x128x128xbf16> to vector<128x128xbf16>
    %cst_37 = arith.constant dense<0.000000e+00> : vector<16x128xf32>
    %44 = tpu.matmul %41, %43, %cst_37 {dimension_numbers = #tpu.dot_dimension_numbers<[1], [0], [0], [1], [0, 0, 1, 1], [], []>} : vector<16x128xbf16>, vector<128x128xbf16>, vector<16x128xf32> -> vector<16x128xf32>
    %45 = arith.addf %40, %44 : vector<16x128xf32>
    %c2 = arith.constant 2 : index
    %c0_38 = arith.constant 0 : index
    %46 = vector.load %arg18[%c2, %c0_38] : memref<18x128xbf16, #tpu.memory_space<vmem>>, vector<16x128xbf16>
    %c2_39 = arith.constant 2 : index
    %c0_40 = arith.constant 0 : index
    %c0_41 = arith.constant 0 : index
    %47 = vector.load %arg11[%c2_39, %c0_40, %c0_41] : memref<3x128x128xbf16, #tpu.memory_space<vmem>>, vector<1x128x128xbf16>
    %48 = vector.shape_cast %47 : vector<1x128x128xbf16> to vector<128x128xbf16>
    %cst_42 = arith.constant dense<0.000000e+00> : vector<16x128xf32>
    %49 = tpu.matmul %46, %48, %cst_42 {dimension_numbers = #tpu.dot_dimension_numbers<[1], [0], [0], [1], [0, 0, 1, 1], [], []>} : vector<16x128xbf16>, vector<128x128xbf16>, vector<16x128xf32> -> vector<16x128xf32>
    %50 = arith.addf %45, %49 : vector<16x128xf32>
    %51 = arith.mulf %6, %50 : vector<16x128xf32>
    %c0_43 = arith.constant 0 : index
    %c0_44 = arith.constant 0 : index
    %c0_45 = arith.constant 0 : index
    %52 = vector.load %arg5[%c0_43, %c0_44, %c0_45] : memref<1x16x128xf32, #tpu.memory_space<vmem>>, vector<1x16x128xf32>
    %53 = vector.shape_cast %52 : vector<1x16x128xf32> to vector<16x128xf32>
    %c0_46 = arith.constant 0 : index
    %c0_47 = arith.constant 0 : index
    %c0_48 = arith.constant 0 : index
    %54 = vector.load %arg6[%c0_46, %c0_47, %c0_48] : memref<1x16x128xf32, #tpu.memory_space<vmem>>, vector<1x16x128xf32>
    %55 = vector.shape_cast %54 : vector<1x16x128xf32> to vector<16x128xf32>
    %c0_49 = arith.constant 0 : index
    %c0_50 = arith.constant 0 : index
    %c0_51 = arith.constant 0 : index
    %56 = vector.load %arg7[%c0_49, %c0_50, %c0_51] : memref<1x16x128xf32, #tpu.memory_space<vmem>>, vector<1x16x128xf32>
    %57 = vector.shape_cast %56 : vector<1x16x128xf32> to vector<16x128xf32>
    %c0_52 = arith.constant 0 : index
    %c0_53 = arith.constant 0 : index
    %58 = vector.load %arg15[%c0_52, %c0_53] : memref<1x128xf32, #tpu.memory_space<vmem>>, vector<1x128xf32>
    %59 = arith.mulf %51, %55 : vector<16x128xf32>
    %60 = vector.broadcast %58 : vector<1x128xf32> to vector<16x128xf32>
    %61 = arith.mulf %59, %60 : vector<16x128xf32>
    %cst_54 = arith.constant 0.000000e+00 : f32
    %62 = vector.broadcast %cst_54 : f32 to vector<16x128xf32>
    %63 = arith.cmpf oge, %57, %62 : vector<16x128xf32>
    %cst_55 = arith.constant 1.000000e+00 : f32
    %cst_56 = arith.constant -1.000000e+00 : f32
    %64 = vector.broadcast %cst_55 : f32 to vector<16x128xf32>
    %65 = vector.broadcast %cst_56 : f32 to vector<16x128xf32>
    %66 = arith.select %63, %64, %65 : vector<16x128xi1>, vector<16x128xf32>
    %cst_57 = arith.constant 0.00999999977 : f32
    %67 = vector.broadcast %cst_57 : f32 to vector<16x128xf32>
    %68 = arith.mulf %67, %66 : vector<16x128xf32>
    %69 = arith.addf %57, %68 : vector<16x128xf32>
    %cst_58 = arith.constant 0.000000e+00 : f32
    %70 = vector.broadcast %cst_58 : f32 to vector<16x128xf32>
    %71 = arith.cmpf oge, %55, %70 : vector<16x128xf32>
    %cst_59 = arith.constant 1.000000e+00 : f32
    %cst_60 = arith.constant -1.000000e+00 : f32
    %72 = vector.broadcast %cst_59 : f32 to vector<16x128xf32>
    %73 = vector.broadcast %cst_60 : f32 to vector<16x128xf32>
    %74 = arith.select %71, %72, %73 : vector<16x128xi1>, vector<16x128xf32>
    %cst_61 = arith.constant 0.00999999977 : f32
    %75 = vector.broadcast %cst_61 : f32 to vector<16x128xf32>
    %76 = arith.mulf %75, %74 : vector<16x128xf32>
    %77 = arith.addf %55, %76 : vector<16x128xf32>
    %78 = arith.mulf %69, %77 : vector<16x128xf32>
    %79 = arith.divf %61, %78 : vector<16x128xf32>
    %80 = arith.truncf %79 : vector<16x128xf32> to vector<16x128xbf16>
    %c1_62 = arith.constant 1 : index
    %c0_63 = arith.constant 0 : index
    %81 = vector.load %arg18[%c1_62, %c0_63] : memref<18x128xbf16, #tpu.memory_space<vmem>>, vector<16x128xbf16>
    tpu.vector_store %arg18[%c1_62, %c0_63], %80 {strides = array<i32>} : memref<18x128xbf16, #tpu.memory_space<vmem>>, vector<16x128xbf16>,
    %cst_64 = arith.constant 0.000000e+00 : f32
    %82 = vector.broadcast %cst_64 : f32 to vector<16x128xf32>
    %c0_65 = arith.constant 0 : index
    %c0_66 = arith.constant 0 : index
    %83 = vector.load %arg18[%c0_65, %c0_66] : memref<18x128xbf16, #tpu.memory_space<vmem>>, vector<16x128xbf16>
    %c0_67 = arith.constant 0 : index
    %c0_68 = arith.constant 0 : index
    %c0_69 = arith.constant 0 : index
    %84 = vector.load %arg12[%c0_67, %c0_68, %c0_69] : memref<3x128x128xbf16, #tpu.memory_space<vmem>>, vector<1x128x128xbf16>
    %85 = vector.shape_cast %84 : vector<1x128x128xbf16> to vector<128x128xbf16>
    %cst_70 = arith.constant dense<0.000000e+00> : vector<16x128xf32>
    %86 = tpu.matmul %83, %85, %cst_70 {dimension_numbers = #tpu.dot_dimension_numbers<[1], [0], [0], [1], [0, 0, 1, 1], [], []>} : vector<16x128xbf16>, vector<128x128xbf16>, vector<16x128xf32> -> vector<16x128xf32>
    %87 = arith.addf %82, %86 : vector<16x128xf32>
    %c1_71 = arith.constant 1 : index
    %c0_72 = arith.constant 0 : index
    %88 = vector.load %arg18[%c1_71, %c0_72] : memref<18x128xbf16, #tpu.memory_space<vmem>>, vector<16x128xbf16>
    %c1_73 = arith.constant 1 : index
    %c0_74 = arith.constant 0 : index
    %c0_75 = arith.constant 0 : index
    %89 = vector.load %arg12[%c1_73, %c0_74, %c0_75] : memref<3x128x128xbf16, #tpu.memory_space<vmem>>, vector<1x128x128xbf16>
    %90 = vector.shape_cast %89 : vector<1x128x128xbf16> to vector<128x128xbf16>
    %cst_76 = arith.constant dense<0.000000e+00> : vector<16x128xf32>
    %91 = tpu.matmul %88, %90, %cst_76 {dimension_numbers = #tpu.dot_dimension_numbers<[1], [0], [0], [1], [0, 0, 1, 1], [], []>} : vector<16x128xbf16>, vector<128x128xbf16>, vector<16x128xf32> -> vector<16x128xf32>
    %92 = arith.addf %87, %91 : vector<16x128xf32>
    %c2_77 = arith.constant 2 : index
    %c0_78 = arith.constant 0 : index
    %93 = vector.load %arg18[%c2_77, %c0_78] : memref<18x128xbf16, #tpu.memory_space<vmem>>, vector<16x128xbf16>
    %c2_79 = arith.constant 2 : index
    %c0_80 = arith.constant 0 : index
    %c0_81 = arith.constant 0 : index
    %94 = vector.load %arg12[%c2_79, %c0_80, %c0_81] : memref<3x128x128xbf16, #tpu.memory_space<vmem>>, vector<1x128x128xbf16>
    %95 = vector.shape_cast %94 : vector<1x128x128xbf16> to vector<128x128xbf16>
    %cst_82 = arith.constant dense<0.000000e+00> : vector<16x128xf32>
    %96 = tpu.matmul %93, %95, %cst_82 {dimension_numbers = #tpu.dot_dimension_numbers<[1], [0], [0], [1], [0, 0, 1, 1], [], []>} : vector<16x128xbf16>, vector<128x128xbf16>, vector<16x128xf32> -> vector<16x128xf32>
    %97 = arith.addf %92, %96 : vector<16x128xf32>
    %98 = arith.mulf %53, %97 : vector<16x128xf32>
    %c0_83 = arith.constant 0 : index
    %c0_84 = arith.constant 0 : index
    %c0_85 = arith.constant 0 : index
    %99 = vector.load %arg8[%c0_83, %c0_84, %c0_85] : memref<1x16x64xf32, #tpu.memory_space<vmem>>, vector<1x16x64xf32>
    %100 = vector.shape_cast %99 : vector<1x16x64xf32> to vector<16x64xf32>
    %c0_86 = arith.constant 0 : index
    %c0_87 = arith.constant 0 : index
    %c0_88 = arith.constant 0 : index
    %101 = vector.load %arg9[%c0_86, %c0_87, %c0_88] : memref<1x16x128xf32, #tpu.memory_space<vmem>>, vector<1x16x128xf32>
    %102 = vector.shape_cast %101 : vector<1x16x128xf32> to vector<16x128xf32>
    %c0_89 = arith.constant 0 : index
    %c0_90 = arith.constant 0 : index
    %c0_91 = arith.constant 0 : index
    %103 = vector.load %arg10[%c0_89, %c0_90, %c0_91] : memref<1x16x128xf32, #tpu.memory_space<vmem>>, vector<1x16x128xf32>
    %104 = vector.shape_cast %103 : vector<1x16x128xf32> to vector<16x128xf32>
    %c0_92 = arith.constant 0 : index
    %c0_93 = arith.constant 0 : index
    %105 = vector.load %arg16[%c0_92, %c0_93] : memref<1x128xf32, #tpu.memory_space<vmem>>, vector<1x128xf32>
    %106 = arith.mulf %98, %102 : vector<16x128xf32>
    %107 = vector.broadcast %105 : vector<1x128xf32> to vector<16x128xf32>
    %108 = arith.mulf %106, %107 : vector<16x128xf32>
    %cst_94 = arith.constant 0.000000e+00 : f32
    %109 = vector.broadcast %cst_94 : f32 to vector<16x128xf32>
    %110 = arith.cmpf oge, %104, %109 : vector<16x128xf32>
    %cst_95 = arith.constant 1.000000e+00 : f32
    %cst_96 = arith.constant -1.000000e+00 : f32
    %111 = vector.broadcast %cst_95 : f32 to vector<16x128xf32>
    %112 = vector.broadcast %cst_96 : f32 to vector<16x128xf32>
    %113 = arith.select %110, %111, %112 : vector<16x128xi1>, vector<16x128xf32>
    %cst_97 = arith.constant 0.00999999977 : f32
    %114 = vector.broadcast %cst_97 : f32 to vector<16x128xf32>
    %115 = arith.mulf %114, %113 : vector<16x128xf32>
    %116 = arith.addf %104, %115 : vector<16x128xf32>
    %cst_98 = arith.constant 0.000000e+00 : f32
    %117 = vector.broadcast %cst_98 : f32 to vector<16x128xf32>
    %118 = arith.cmpf oge, %102, %117 : vector<16x128xf32>
    %cst_99 = arith.constant 1.000000e+00 : f32
    %cst_100 = arith.constant -1.000000e+00 : f32
    %119 = vector.broadcast %cst_99 : f32 to vector<16x128xf32>
    %120 = vector.broadcast %cst_100 : f32 to vector<16x128xf32>
    %121 = arith.select %118, %119, %120 : vector<16x128xi1>, vector<16x128xf32>
    %cst_101 = arith.constant 0.00999999977 : f32
    %122 = vector.broadcast %cst_101 : f32 to vector<16x128xf32>
    %123 = arith.mulf %122, %121 : vector<16x128xf32>
    %124 = arith.addf %102, %123 : vector<16x128xf32>
    %125 = arith.mulf %116, %124 : vector<16x128xf32>
    %126 = arith.divf %108, %125 : vector<16x128xf32>
    %127 = arith.truncf %126 : vector<16x128xf32> to vector<16x128xbf16>
    %c1_102 = arith.constant 1 : index
    %c0_103 = arith.constant 0 : index
    %128 = vector.load %arg18[%c1_102, %c0_103] : memref<18x128xbf16, #tpu.memory_space<vmem>>, vector<16x128xbf16>
    tpu.vector_store %arg18[%c1_102, %c0_103], %127 {strides = array<i32>} : memref<18x128xbf16, #tpu.memory_space<vmem>>, vector<16x128xbf16>,
    %cst_104 = arith.constant 0.000000e+00 : f32
    %129 = vector.broadcast %cst_104 : f32 to vector<16x64xf32>
    %c0_105 = arith.constant 0 : index
    %c0_106 = arith.constant 0 : index
    %130 = vector.load %arg18[%c0_105, %c0_106] : memref<18x128xbf16, #tpu.memory_space<vmem>>, vector<16x128xbf16>
    %c0_107 = arith.constant 0 : index
    %c0_108 = arith.constant 0 : index
    %c0_109 = arith.constant 0 : index
    %131 = vector.load %arg13[%c0_107, %c0_108, %c0_109] : memref<3x128x64xbf16, #tpu.memory_space<vmem>>, vector<1x128x64xbf16>
    %132 = vector.shape_cast %131 : vector<1x128x64xbf16> to vector<128x64xbf16>
    %cst_110 = arith.constant dense<0.000000e+00> : vector<16x64xf32>
    %133 = tpu.matmul %130, %132, %cst_110 {dimension_numbers = #tpu.dot_dimension_numbers<[1], [0], [0], [1], [0, 0, 1, 1], [], []>} : vector<16x128xbf16>, vector<128x64xbf16>, vector<16x64xf32> -> vector<16x64xf32>
    %134 = arith.addf %129, %133 : vector<16x64xf32>
    %c1_111 = arith.constant 1 : index
    %c0_112 = arith.constant 0 : index
    %135 = vector.load %arg18[%c1_111, %c0_112] : memref<18x128xbf16, #tpu.memory_space<vmem>>, vector<16x128xbf16>
    %c1_113 = arith.constant 1 : index
    %c0_114 = arith.constant 0 : index
    %c0_115 = arith.constant 0 : index
    %136 = vector.load %arg13[%c1_113, %c0_114, %c0_115] : memref<3x128x64xbf16, #tpu.memory_space<vmem>>, vector<1x128x64xbf16>
    %137 = vector.shape_cast %136 : vector<1x128x64xbf16> to vector<128x64xbf16>
    %cst_116 = arith.constant dense<0.000000e+00> : vector<16x64xf32>
    %138 = tpu.matmul %135, %137, %cst_116 {dimension_numbers = #tpu.dot_dimension_numbers<[1], [0], [0], [1], [0, 0, 1, 1], [], []>} : vector<16x128xbf16>, vector<128x64xbf16>, vector<16x64xf32> -> vector<16x64xf32>
    %139 = arith.addf %134, %138 : vector<16x64xf32>
    %c2_117 = arith.constant 2 : index
    %c0_118 = arith.constant 0 : index
    %140 = vector.load %arg18[%c2_117, %c0_118] : memref<18x128xbf16, #tpu.memory_space<vmem>>, vector<16x128xbf16>
    %c2_119 = arith.constant 2 : index
    %c0_120 = arith.constant 0 : index
    %c0_121 = arith.constant 0 : index
    %141 = vector.load %arg13[%c2_119, %c0_120, %c0_121] : memref<3x128x64xbf16, #tpu.memory_space<vmem>>, vector<1x128x64xbf16>
    %142 = vector.shape_cast %141 : vector<1x128x64xbf16> to vector<128x64xbf16>
    %cst_122 = arith.constant dense<0.000000e+00> : vector<16x64xf32>
    %143 = tpu.matmul %140, %142, %cst_122 {dimension_numbers = #tpu.dot_dimension_numbers<[1], [0], [0], [1], [0, 0, 1, 1], [], []>} : vector<16x128xbf16>, vector<128x64xbf16>, vector<16x64xf32> -> vector<16x64xf32>
    %144 = arith.addf %139, %143 : vector<16x64xf32>
    %145 = arith.mulf %100, %144 : vector<16x64xf32>
    %c0_123 = arith.constant 0 : index
    %c0_124 = arith.constant 0 : index
    %c0_125 = arith.constant 0 : index
    %146 = vector.load %arg17[%c0_123, %c0_124, %c0_125] : memref<1x16x64xf32, #tpu.memory_space<vmem>>, vector<1x16x64xf32>
    %147 = vector.shape_cast %146 : vector<1x16x64xf32> to vector<16x64xf32>
    %148 = vector.shape_cast %145 : vector<16x64xf32> to vector<1x16x64xf32>
    tpu.vector_store %arg17[%c0_123, %c0_124, %c0_125], %148 {strides = array<i32>} : memref<1x16x64xf32, #tpu.memory_space<vmem>>, vector<1x16x64xf32>,
    return
  }
  func.func @transform_0(%arg0: i32) -> (i32, i32, i32) {
    %c0_i32 = arith.constant 0 : i32
    %c0_i32_0 = arith.constant 0 : i32
    %c0_i32_1 = arith.constant 0 : i32
    return %arg0, %c0_i32, %c0_i32_0 : i32, i32, i32
  }
  func.func @transform_1(%arg0: i32) -> (i32, i32, i32) {
    %c0_i32 = arith.constant 0 : i32
    %c0_i32_0 = arith.constant 0 : i32
    %c0_i32_1 = arith.constant 0 : i32
    return %arg0, %c0_i32, %c0_i32_0 : i32, i32, i32
  }
  func.func @transform_2(%arg0: i32) -> (i32, i32, i32) {
    %c0_i32 = arith.constant 0 : i32
    %c0_i32_0 = arith.constant 0 : i32
    %c0_i32_1 = arith.constant 0 : i32
    return %arg0, %c0_i32, %c0_i32_0 : i32, i32, i32
  }
  func.func @transform_3(%arg0: i32) -> (i32, i32, i32) {
    %c0_i32 = arith.constant 0 : i32
    %c0_i32_0 = arith.constant 0 : i32
    %c0_i32_1 = arith.constant 0 : i32
    return %arg0, %c0_i32, %c0_i32_0 : i32, i32, i32
  }
  func.func @transform_4(%arg0: i32) -> (i32, i32, i32) {
    %c0_i32 = arith.constant 0 : i32
    %c0_i32_0 = arith.constant 0 : i32
    %c0_i32_1 = arith.constant 0 : i32
    return %arg0, %c0_i32, %c0_i32_0 : i32, i32, i32
  }
  func.func @transform_5(%arg0: i32) -> (i32, i32, i32) {
    %c0_i32 = arith.constant 0 : i32
    %c0_i32_0 = arith.constant 0 : i32
    %c0_i32_1 = arith.constant 0 : i32
    return %arg0, %c0_i32, %c0_i32_0 : i32, i32, i32
  }
  func.func @transform_6(%arg0: i32) -> (i32, i32, i32) {
    %c0_i32 = arith.constant 0 : i32
    %c0_i32_0 = arith.constant 0 : i32
    %c0_i32_1 = arith.constant 0 : i32
    return %arg0, %c0_i32, %c0_i32_0 : i32, i32, i32
  }
  func.func @transform_7(%arg0: i32) -> (i32, i32, i32) {
    %c0_i32 = arith.constant 0 : i32
    %c0_i32_0 = arith.constant 0 : i32
    %c0_i32_1 = arith.constant 0 : i32
    return %arg0, %c0_i32, %c0_i32_0 : i32, i32, i32
  }
  func.func @transform_8(%arg0: i32) -> (i32, i32, i32) {
    %c0_i32 = arith.constant 0 : i32
    %c0_i32_0 = arith.constant 0 : i32
    %c0_i32_1 = arith.constant 0 : i32
    return %arg0, %c0_i32, %c0_i32_0 : i32, i32, i32
  }
  func.func @transform_9(%arg0: i32) -> (i32, i32, i32) {
    %c0_i32 = arith.constant 0 : i32
    %c0_i32_0 = arith.constant 0 : i32
    %c0_i32_1 = arith.constant 0 : i32
    return %arg0, %c0_i32, %c0_i32_0 : i32, i32, i32
  }
  func.func @transform_10(%arg0: i32) -> (i32, i32, i32) {
    %c0_i32 = arith.constant 0 : i32
    %c0_i32_0 = arith.constant 0 : i32
    %c0_i32_1 = arith.constant 0 : i32
    %c0_i32_2 = arith.constant 0 : i32
    return %c0_i32, %c0_i32_0, %c0_i32_1 : i32, i32, i32
  }
  func.func @transform_11(%arg0: i32) -> (i32, i32, i32) {
    %c0_i32 = arith.constant 0 : i32
    %c0_i32_0 = arith.constant 0 : i32
    %c0_i32_1 = arith.constant 0 : i32
    %c0_i32_2 = arith.constant 0 : i32
    return %c0_i32, %c0_i32_0, %c0_i32_1 : i32, i32, i32
  }
  func.func @transform_12(%arg0: i32) -> (i32, i32, i32) {
    %c0_i32 = arith.constant 0 : i32
    %c0_i32_0 = arith.constant 0 : i32
    %c0_i32_1 = arith.constant 0 : i32
    %c0_i32_2 = arith.constant 0 : i32
    return %c0_i32, %c0_i32_0, %c0_i32_1 : i32, i32, i32
  }
  func.func @transform_13(%arg0: i32) -> (i32, i32) {
    %c0_i32 = arith.constant 0 : i32
    %c0_i32_0 = arith.constant 0 : i32
    %c0_i32_1 = arith.constant 0 : i32
    return %c0_i32, %c0_i32_0 : i32, i32
  }
  func.func @transform_14(%arg0: i32) -> (i32, i32) {
    %c0_i32 = arith.constant 0 : i32
    %c0_i32_0 = arith.constant 0 : i32
    %c0_i32_1 = arith.constant 0 : i32
    return %c0_i32, %c0_i32_0 : i32, i32
  }
  func.func @transform_15(%arg0: i32) -> (i32, i32) {
    %c0_i32 = arith.constant 0 : i32
    %c0_i32_0 = arith.constant 0 : i32
    %c0_i32_1 = arith.constant 0 : i32
    return %c0_i32, %c0_i32_0 : i32, i32
  }
  func.func @transform_16(%arg0: i32) -> (i32, i32, i32) {
    %c0_i32 = arith.constant 0 : i32
    %c0_i32_0 = arith.constant 0 : i32
    %c0_i32_1 = arith.constant 0 : i32
    return %arg0, %c0_i32, %c0_i32_0 : i32, i32, i32
  }
}

</mosaic_0001>

<llo_original>
// kernel: tpu_custom_call.1
$region0: #{tpu_custom_call.1}
  #allocation0 [shape = 'u32[]', space=smem, size = 0x4, offset = 0x4, fixed_abs, tag = 'smem constant byte address 0x4 - core index']
  #allocation1 [shape = 'u32[144,128]{1,0:T(1,128)}', space=vmem, size = 0x12000, scoped, tag = 'internal scratch']
  #allocation2 [shape = 'bf16[18,128]{1,0:T(8,128)(2,1)}', space=vmem, size = 0x1800, scoped, tag = 'scratch operand']
  %s0 = inlined_call_operand.vmem [shape: f32[2,16,128], index: 0, kind: input, shape index: {}]
  %s1 = inlined_call_operand.vmem [shape: f32[2,16,128], index: 1, kind: input, shape index: {}]
  %s2 = inlined_call_operand.vmem [shape: f32[2,16,128], index: 2, kind: input, shape index: {}]
  %s3 = inlined_call_operand.vmem [shape: f32[2,16,128], index: 3, kind: input, shape index: {}]
  %s4 = inlined_call_operand.hbm [shape: f32[2,16,128], index: 4, kind: input, shape index: {}]
  %s5 = inlined_call_operand.hbm [shape: f32[2,16,128], index: 5, kind: input, shape index: {}]
  %s6 = inlined_call_operand.hbm [shape: f32[2,16,128], index: 6, kind: input, shape index: {}]
  %s7 = inlined_call_operand.hbm [shape: f32[2,16,64], index: 7, kind: input, shape index: {}]
  %s8 = inlined_call_operand.hbm [shape: f32[2,16,128], index: 8, kind: input, shape index: {}]
  %s9 = inlined_call_operand.hbm [shape: f32[2,16,128], index: 9, kind: input, shape index: {}]
  %s10 = inlined_call_operand.vmem [shape: bf16[3,128,128], index: 10, kind: input, shape index: {}]
  %s11 = inlined_call_operand.hbm [shape: bf16[3,128,128], index: 11, kind: input, shape index: {}]
  %s12 = inlined_call_operand.vmem [shape: bf16[3,128,64], index: 12, kind: input, shape index: {}]
  %s13 = inlined_call_operand.vmem [shape: f32[1,128], index: 13, kind: input, shape index: {}]
  %s14 = inlined_call_operand.vmem [shape: f32[1,128], index: 14, kind: input, shape index: {}]
  %s15 = inlined_call_operand.vmem [shape: f32[1,128], index: 15, kind: input, shape index: {}]
  %s16 = inlined_call_operand.hbm [shape: f32[2,16,64], index: 16, kind: output, shape index: {}]
  %s17 = sld [smem:[#allocation0]]
  $region125: #{tpu_custom_call.1} parent=0
    _
  %s19 = ssub.s32 1, %s17
  %s20 = scalar_select 0, %s19, %s17
  $region1: #{tpu_custom_call.1} parent=0
    #allocation3 [shape = 'u8[16384]{0}', space=vmem, size = 0x4000, scoped, tag = 'input window, operand 4']
    #allocation4 [shape = 's32[2]{0}', space=sflag, size = 0x8, scoped, tag = 'scoped memory for tpu_custom_call.1']
    #allocation5 [shape = 's32[2]{0}', space=sflag, size = 0x8, scoped, tag = 'scoped memory for tpu_custom_call.1']
    #allocation6 [shape = 'u8[16384]{0}', space=vmem, size = 0x4000, scoped, tag = 'input window, operand 5']
    #allocation7 [shape = 's32[2]{0}', space=sflag, size = 0x8, scoped, tag = 'scoped memory for tpu_custom_call.1']
    #allocation8 [shape = 'u8[16384]{0}', space=vmem, size = 0x4000, scoped, tag = 'input window, operand 6']
    #allocation9 [shape = 'u8[16384]{0}', space=vmem, size = 0x4000, scoped, tag = 'input window, operand 7']
    #allocation10 [shape = 's32[2]{0}', space=sflag, size = 0x8, scoped, tag = 'scoped memory for tpu_custom_call.1']
    #allocation11 [shape = 'u8[16384]{0}', space=vmem, size = 0x4000, scoped, tag = 'input window, operand 8']
    #allocation12 [shape = 'u8[16384]{0}', space=vmem, size = 0x4000, scoped, tag = 'input window, operand 9']
    #allocation13 [shape = 's32[2]{0}', space=sflag, size = 0x8, scoped, tag = 'scoped memory for tpu_custom_call.1']
    #allocation14 [shape = 'u8[98304]{0}', space=vmem, size = 0x18000, scoped, tag = 'input window, operand 11, single buffered']
    #allocation15 [shape = 'u8[16384]{0}', space=vmem, size = 0x4000, scoped, tag = 'output window, operand 0']
    %21 = vsyncpa [#allocation4], 0
    %s22 = scalar_lea.sflag [#allocation4], 1
    %23 = vsyncpa %s22, 0
    %24 = vsyncpa [#allocation7], 0
    %s25 = scalar_lea.sflag [#allocation7], 1
    %26 = vsyncpa %s25, 0
    %27 = vsyncpa [#allocation10], 0
    %s28 = scalar_lea.sflag [#allocation10], 1
    %29 = vsyncpa %s28, 0
    %30 = vsyncpa [#allocation13], 0
    %s31 = scalar_lea.sflag [#allocation13], 1
    %32 = vsyncpa %s31, 0
    %33 = vsyncpa [#allocation5], 0
    %s34 = scalar_lea.sflag [#allocation5], 1
    %35 = vsyncpa %s34, 0
    loop: start=0, step=1, limit=4
    $region2: #{tpu_custom_call.1} parent=1 // loop_pre_header
      _
    $region3: #{tpu_custom_call.1} parent=1 // loop_header
      %s37 = sphi 0, %s41
      %p38 = scmp.ge.s32.totalorder %s37, 4
      %s47 = sphi 0, %s49
      %s50 = sphi 0, %s47
      %s51 = sphi 0, %s50
      %s67 = sphi 0, %s51
      %s73 = sphi 0, %s75
      %s76 = sphi 0, %s73
      %s77 = sphi 0, %s76
      %s93 = sphi 0, %s77
      %s99 = sphi 0, %s101
      %s102 = sphi 0, %s99
      %s103 = sphi 0, %s102
      %s119 = sphi 0, %s103
      %s125 = sphi 0, %s127
      %s128 = sphi 0, %s125
      %s129 = sphi 0, %s128
      %s145 = sphi 0, %s129
      %s151 = sphi 0, %s153
      %s154 = sphi 0, %s151
      %s155 = sphi 0, %s154
      %s171 = sphi 0, %s155
      %s177 = sphi 0, %s179
      %s180 = sphi 0, %s177
      %s181 = sphi 0, %s180
      %s197 = sphi 0, %s181
      %s203 = sphi 0, %s205
      %s206 = sphi 0, %s203
      %s207 = sphi 0, %s206
      %s223 = sphi 0, %s207
      %s229 = sphi 0, %s231
      %s232 = sphi 0, %s229
      %s233 = sphi 0, %s232
      %s249 = sphi 0, %s233
      %s255 = sphi 0, %s257
      %s258 = sphi 0, %s255
      %s259 = sphi 0, %s258
      %s275 = sphi 0, %s259
      %s281 = sphi 0, %s283
      %s284 = sphi 0, %s281
      %s285 = sphi 0, %s284
      %s301 = sphi 0, %s285
      %s305 = sphi 0, %s305
      %s307 = sphi 0, %s305
      %s308 = sphi 0, %s307
      %s322 = sphi 0, %s308
      %s326 = sphi 0, %s326
      %s328 = sphi 0, %s326
      %s329 = sphi 0, %s328
      %s343 = sphi 0, %s329
      %s347 = sphi 0, %s347
      %s349 = sphi 0, %s347
      %s350 = sphi 0, %s349
      %s364 = sphi 0, %s350
      %s368 = sphi 0, %s368
      %s370 = sphi 0, %s368
      %s371 = sphi 0, %s370
      %s385 = sphi 0, %s371
      %s389 = sphi 0, %s389
      %s391 = sphi 0, %s389
      %s392 = sphi 0, %s391
      %s406 = sphi 0, %s392
      %s410 = sphi 0, %s410
      %s412 = sphi 0, %s410
      %s413 = sphi 0, %s412
      %s427 = sphi 0, %s413
      %s433 = sphi 0, %s435
      %s436 = sphi 0, %s433
      %s437 = sphi 0, %s436
      %s453 = sphi 0, %s437
    $region4: #{tpu_custom_call.1} parent=1 // loop_header_branch
      %40 = sbr.rel (%p38) target = $region8
    $region5: #{tpu_custom_call.1} parent=1 // loop_body
      %s42 = ssub.s32 %s37, 1
      %s43 = ssub.s32 %s37, 2
      %s44 = sadd.s32 %s37, 1
      %s45 = ssub.s32 %s37, %s44
      %p46 = scmp.eq.s32.totalorder %s45, 0
      %s48 = sadd.s32 %s47, 1
      %s49 = scalar_select %p46, %s47, %s48
      %p52 = pneg %p46
      %p53 = scmp.eq.s32.totalorder %s37, 1
      %p54 = por %p52, %p53
      %p55 = scmp.ne.s32.totalorder %s47, %s50
      %p56 = scmp.eq.s32.totalorder %s37, 0
      %p57 = por %p55, %p56
      %p58 = scmp.ne.s32.totalorder %s47, %s50
      %p59 = scmp.eq.s32.totalorder %s42, 1
      %p60 = por %p58, %p59
      %p61 = scmp.ne.s32.totalorder %s50, %s51
      %p62 = scmp.eq.s32.totalorder %s42, 0
      %p63 = por %p61, %p62
      %p64 = scmp.ne.s32.totalorder %s50, %s51
      %p65 = scmp.eq.s32.totalorder %s43, 1
      %p66 = por %p64, %p65
      %p68 = scmp.ne.s32.totalorder %s51, %s67
      %p69 = scmp.eq.s32.totalorder %s43, 0
      %p70 = por %p68, %p69
      %s71 = ssub.s32 %s37, %s44
      %p72 = scmp.eq.s32.totalorder %s71, 0
      %s74 = sadd.s32 %s73, 1
      %s75 = scalar_select %p72, %s73, %s74
      %p78 = pneg %p72
      %p79 = scmp.eq.s32.totalorder %s37, 1
      %p80 = por %p78, %p79
      %p81 = scmp.ne.s32.totalorder %s73, %s76
      %p82 = scmp.eq.s32.totalorder %s37, 0
      %p83 = por %p81, %p82
      %p84 = scmp.ne.s32.totalorder %s73, %s76
      %p85 = scmp.eq.s32.totalorder %s42, 1
      %p86 = por %p84, %p85
      %p87 = scmp.ne.s32.totalorder %s76, %s77
      %p88 = scmp.eq.s32.totalorder %s42, 0
      %p89 = por %p87, %p88
      %p90 = scmp.ne.s32.totalorder %s76, %s77
      %p91 = scmp.eq.s32.totalorder %s43, 1
      %p92 = por %p90, %p91
      %p94 = scmp.ne.s32.totalorder %s77, %s93
      %p95 = scmp.eq.s32.totalorder %s43, 0
      %p96 = por %p94, %p95
      %s97 = ssub.s32 %s37, %s44
      %p98 = scmp.eq.s32.totalorder %s97, 0
      %s100 = sadd.s32 %s99, 1
      %s101 = scalar_select %p98, %s99, %s100
      %p104 = pneg %p98
      %p105 = scmp.eq.s32.totalorder %s37, 1
      %p106 = por %p104, %p105
      %p107 = scmp.ne.s32.totalorder %s99, %s102
      %p108 = scmp.eq.s32.totalorder %s37, 0
      %p109 = por %p107, %p108
      %p110 = scmp.ne.s32.totalorder %s99, %s102
      %p111 = scmp.eq.s32.totalorder %s42, 1
      %p112 = por %p110, %p111
      %p113 = scmp.ne.s32.totalorder %s102, %s103
      %p114 = scmp.eq.s32.totalorder %s42, 0
      %p115 = por %p113, %p114
      %p116 = scmp.ne.s32.totalorder %s102, %s103
      %p117 = scmp.eq.s32.totalorder %s43, 1
      %p118 = por %p116, %p117
      %p120 = scmp.ne.s32.totalorder %s103, %s119
      %p121 = scmp.eq.s32.totalorder %s43, 0
      %p122 = por %p120, %p121
      %s123 = ssub.s32 %s37, %s44
      %p124 = scmp.eq.s32.totalorder %s123, 0
      %s126 = sadd.s32 %s125, 1
      %s127 = scalar_select %p124, %s125, %s126
      %p130 = pneg %p124
      %p131 = scmp.eq.s32.totalorder %s37, 1
      %p132 = por %p130, %p131
      %p133 = scmp.ne.s32.totalorder %s125, %s128
      %p134 = scmp.eq.s32.totalorder %s37, 0
      %p135 = por %p133, %p134
      %p136 = scmp.ne.s32.totalorder %s125, %s128
      %p137 = scmp.eq.s32.totalorder %s42, 1
      %p138 = por %p136, %p137
      %p139 = scmp.ne.s32.totalorder %s128, %s129
      %p140 = scmp.eq.s32.totalorder %s42, 0
      %p141 = por %p139, %p140
      %p142 = scmp.ne.s32.totalorder %s128, %s129
      %p143 = scmp.eq.s32.totalorder %s43, 1
      %p144 = por %p142, %p143
      %p146 = scmp.ne.s32.totalorder %s129, %s145
      %p147 = scmp.eq.s32.totalorder %s43, 0
      %p148 = por %p146, %p147
      %s149 = ssub.s32 %s37, %s44
      %p150 = scmp.eq.s32.totalorder %s149, 0
      %s152 = sadd.s32 %s151, 1
      %s153 = scalar_select %p150, %s151, %s152
      %p156 = pneg %p150
      %p157 = scmp.eq.s32.totalorder %s37, 1
      %p158 = por %p156, %p157
      %p159 = scmp.ne.s32.totalorder %s151, %s154
      %p160 = scmp.eq.s32.totalorder %s37, 0
      %p161 = por %p159, %p160
      %p162 = scmp.ne.s32.totalorder %s151, %s154
      %p163 = scmp.eq.s32.totalorder %s42, 1
      %p164 = por %p162, %p163
      %p165 = scmp.ne.s32.totalorder %s154, %s155
      %p166 = scmp.eq.s32.totalorder %s42, 0
      %p167 = por %p165, %p166
      %p168 = scmp.ne.s32.totalorder %s154, %s155
      %p169 = scmp.eq.s32.totalorder %s43, 1
      %p170 = por %p168, %p169
      %p172 = scmp.ne.s32.totalorder %s155, %s171
      %p173 = scmp.eq.s32.totalorder %s43, 0
      %p174 = por %p172, %p173
      %s175 = ssub.s32 %s37, %s44
      %p176 = scmp.eq.s32.totalorder %s175, 0
      %s178 = sadd.s32 %s177, 1
      %s179 = scalar_select %p176, %s177, %s178
      %p182 = pneg %p176
      %p183 = scmp.eq.s32.totalorder %s37, 1
      %p184 = por %p182, %p183
      %p185 = scmp.ne.s32.totalorder %s177, %s180
      %p186 = scmp.eq.s32.totalorder %s37, 0
      %p187 = por %p185, %p186
      %p188 = scmp.ne.s32.totalorder %s177, %s180
      %p189 = scmp.eq.s32.totalorder %s42, 1
      %p190 = por %p188, %p189
      %p191 = scmp.ne.s32.totalorder %s180, %s181
      %p192 = scmp.eq.s32.totalorder %s42, 0
      %p193 = por %p191, %p192
      %p194 = scmp.ne.s32.totalorder %s180, %s181
      %p195 = scmp.eq.s32.totalorder %s43, 1
      %p196 = por %p194, %p195
      %p198 = scmp.ne.s32.totalorder %s181, %s197
      %p199 = scmp.eq.s32.totalorder %s43, 0
      %p200 = por %p198, %p199
      %s201 = ssub.s32 %s37, %s44
      %p202 = scmp.eq.s32.totalorder %s201, 0
      %s204 = sadd.s32 %s203, 1
      %s205 = scalar_select %p202, %s203, %s204
      %p208 = pneg %p202
      %p209 = scmp.eq.s32.totalorder %s37, 1
      %p210 = por %p208, %p209
      %p211 = scmp.ne.s32.totalorder %s203, %s206
      %p212 = scmp.eq.s32.totalorder %s37, 0
      %p213 = por %p211, %p212
      %p214 = scmp.ne.s32.totalorder %s203, %s206
      %p215 = scmp.eq.s32.totalorder %s42, 1
      %p216 = por %p214, %p215
      %p217 = scmp.ne.s32.totalorder %s206, %s207
      %p218 = scmp.eq.s32.totalorder %s42, 0
      %p219 = por %p217, %p218
      %p220 = scmp.ne.s32.totalorder %s206, %s207
      %p221 = scmp.eq.s32.totalorder %s43, 1
      %p222 = por %p220, %p221
      %p224 = scmp.ne.s32.totalorder %s207, %s223
      %p225 = scmp.eq.s32.totalorder %s43, 0
      %p226 = por %p224, %p225
      %s227 = ssub.s32 %s37, %s44
      %p228 = scmp.eq.s32.totalorder %s227, 0
      %s230 = sadd.s32 %s229, 1
      %s231 = scalar_select %p228, %s229, %s230
      %p234 = pneg %p228
      %p235 = scmp.eq.s32.totalorder %s37, 1
      %p236 = por %p234, %p235
      %p237 = scmp.ne.s32.totalorder %s229, %s232
      %p238 = scmp.eq.s32.totalorder %s37, 0
      %p239 = por %p237, %p238
      %p240 = scmp.ne.s32.totalorder %s229, %s232
      %p241 = scmp.eq.s32.totalorder %s42, 1
      %p242 = por %p240, %p241
      %p243 = scmp.ne.s32.totalorder %s232, %s233
      %p244 = scmp.eq.s32.totalorder %s42, 0
      %p245 = por %p243, %p244
      %p246 = scmp.ne.s32.totalorder %s232, %s233
      %p247 = scmp.eq.s32.totalorder %s43, 1
      %p248 = por %p246, %p247
      %p250 = scmp.ne.s32.totalorder %s233, %s249
      %p251 = scmp.eq.s32.totalorder %s43, 0
      %p252 = por %p250, %p251
      %s253 = ssub.s32 %s37, %s44
      %p254 = scmp.eq.s32.totalorder %s253, 0
      %s256 = sadd.s32 %s255, 1
      %s257 = scalar_select %p254, %s255, %s256
      %p260 = pneg %p254
      %p261 = scmp.eq.s32.totalorder %s37, 1
      %p262 = por %p260, %p261
      %p263 = scmp.ne.s32.totalorder %s255, %s258
      %p264 = scmp.eq.s32.totalorder %s37, 0
      %p265 = por %p263, %p264
      %p266 = scmp.ne.s32.totalorder %s255, %s258
      %p267 = scmp.eq.s32.totalorder %s42, 1
      %p268 = por %p266, %p267
      %p269 = scmp.ne.s32.totalorder %s258, %s259
      %p270 = scmp.eq.s32.totalorder %s42, 0
      %p271 = por %p269, %p270
      %p272 = scmp.ne.s32.totalorder %s258, %s259
      %p273 = scmp.eq.s32.totalorder %s43, 1
      %p274 = por %p272, %p273
      %p276 = scmp.ne.s32.totalorder %s259, %s275
      %p277 = scmp.eq.s32.totalorder %s43, 0
      %p278 = por %p276, %p277
      %s279 = ssub.s32 %s37, %s44
      %p280 = scmp.eq.s32.totalorder %s279, 0
      %s282 = sadd.s32 %s281, 1
      %s283 = scalar_select %p280, %s281, %s282
      %p286 = pneg %p280
      %p287 = scmp.eq.s32.totalorder %s37, 1
      %p288 = por %p286, %p287
      %p289 = scmp.ne.s32.totalorder %s281, %s284
      %p290 = scmp.eq.s32.totalorder %s37, 0
      %p291 = por %p289, %p290
      %p292 = scmp.ne.s32.totalorder %s281, %s284
      %p293 = scmp.eq.s32.totalorder %s42, 1
      %p294 = por %p292, %p293
      %p295 = scmp.ne.s32.totalorder %s284, %s285
      %p296 = scmp.eq.s32.totalorder %s42, 0
      %p297 = por %p295, %p296
      %p298 = scmp.ne.s32.totalorder %s284, %s285
      %p299 = scmp.eq.s32.totalorder %s43, 1
      %p300 = por %p298, %p299
      %p302 = scmp.ne.s32.totalorder %s285, %s301
      %p303 = scmp.eq.s32.totalorder %s43, 0
      %p304 = por %p302, %p303
      %s306 = sadd.s32 %s305, 1
      %p309 = scmp.eq.s32.totalorder %s37, 1
      %p310 = scmp.ne.s32.totalorder %s305, %s307
      %p311 = scmp.eq.s32.totalorder %s37, 0
      %p312 = por %p310, %p311
      %p313 = scmp.ne.s32.totalorder %s305, %s307
      %p314 = scmp.eq.s32.totalorder %s42, 1
      %p315 = por %p313, %p314
      %p316 = scmp.ne.s32.totalorder %s307, %s308
      %p317 = scmp.eq.s32.totalorder %s42, 0
      %p318 = por %p316, %p317
      %p319 = scmp.ne.s32.totalorder %s307, %s308
      %p320 = scmp.eq.s32.totalorder %s43, 1
      %p321 = por %p319, %p320
      %p323 = scmp.ne.s32.totalorder %s308, %s322
      %p324 = scmp.eq.s32.totalorder %s43, 0
      %p325 = por %p323, %p324
      %s327 = sadd.s32 %s326, 1
      %p330 = scmp.eq.s32.totalorder %s37, 1
      %p331 = scmp.ne.s32.totalorder %s326, %s328
      %p332 = scmp.eq.s32.totalorder %s37, 0
      %p333 = por %p331, %p332
      %p334 = scmp.ne.s32.totalorder %s326, %s328
      %p335 = scmp.eq.s32.totalorder %s42, 1
      %p336 = por %p334, %p335
      %p337 = scmp.ne.s32.totalorder %s328, %s329
      %p338 = scmp.eq.s32.totalorder %s42, 0
      %p339 = por %p337, %p338
      %p340 = scmp.ne.s32.totalorder %s328, %s329
      %p341 = scmp.eq.s32.totalorder %s43, 1
      %p342 = por %p340, %p341
      %p344 = scmp.ne.s32.totalorder %s329, %s343
      %p345 = scmp.eq.s32.totalorder %s43, 0
      %p346 = por %p344, %p345
      %s348 = sadd.s32 %s347, 1
      %p351 = scmp.eq.s32.totalorder %s37, 1
      %p352 = scmp.ne.s32.totalorder %s347, %s349
      %p353 = scmp.eq.s32.totalorder %s37, 0
      %p354 = por %p352, %p353
      %p355 = scmp.ne.s32.totalorder %s347, %s349
      %p356 = scmp.eq.s32.totalorder %s42, 1
      %p357 = por %p355, %p356
      %p358 = scmp.ne.s32.totalorder %s349, %s350
      %p359 = scmp.eq.s32.totalorder %s42, 0
      %p360 = por %p358, %p359
      %p361 = scmp.ne.s32.totalorder %s349, %s350
      %p362 = scmp.eq.s32.totalorder %s43, 1
      %p363 = por %p361, %p362
      %p365 = scmp.ne.s32.totalorder %s350, %s364
      %p366 = scmp.eq.s32.totalorder %s43, 0
      %p367 = por %p365, %p366
      %s369 = sadd.s32 %s368, 1
      %p372 = scmp.eq.s32.totalorder %s37, 1
      %p373 = scmp.ne.s32.totalorder %s368, %s370
      %p374 = scmp.eq.s32.totalorder %s37, 0
      %p375 = por %p373, %p374
      %p376 = scmp.ne.s32.totalorder %s368, %s370
      %p377 = scmp.eq.s32.totalorder %s42, 1
      %p378 = por %p376, %p377
      %p379 = scmp.ne.s32.totalorder %s370, %s371
      %p380 = scmp.eq.s32.totalorder %s42, 0
      %p381 = por %p379, %p380
      %p382 = scmp.ne.s32.totalorder %s370, %s371
      %p383 = scmp.eq.s32.totalorder %s43, 1
      %p384 = por %p382, %p383
      %p386 = scmp.ne.s32.totalorder %s371, %s385
      %p387 = scmp.eq.s32.totalorder %s43, 0
      %p388 = por %p386, %p387
      %s390 = sadd.s32 %s389, 1
      %p393 = scmp.eq.s32.totalorder %s37, 1
      %p394 = scmp.ne.s32.totalorder %s389, %s391
      %p395 = scmp.eq.s32.totalorder %s37, 0
      %p396 = por %p394, %p395
      %p397 = scmp.ne.s32.totalorder %s389, %s391
      %p398 = scmp.eq.s32.totalorder %s42, 1
      %p399 = por %p397, %p398
      %p400 = scmp.ne.s32.totalorder %s391, %s392
      %p401 = scmp.eq.s32.totalorder %s42, 0
      %p402 = por %p400, %p401
      %p403 = scmp.ne.s32.totalorder %s391, %s392
      %p404 = scmp.eq.s32.totalorder %s43, 1
      %p405 = por %p403, %p404
      %p407 = scmp.ne.s32.totalorder %s392, %s406
      %p408 = scmp.eq.s32.totalorder %s43, 0
      %p409 = por %p407, %p408
      %s411 = sadd.s32 %s410, 1
      %p414 = scmp.eq.s32.totalorder %s37, 1
      %p415 = scmp.ne.s32.totalorder %s410, %s412
      %p416 = scmp.eq.s32.totalorder %s37, 0
      %p417 = por %p415, %p416
      %p418 = scmp.ne.s32.totalorder %s410, %s412
      %p419 = scmp.eq.s32.totalorder %s42, 1
      %p420 = por %p418, %p419
      %p421 = scmp.ne.s32.totalorder %s412, %s413
      %p422 = scmp.eq.s32.totalorder %s42, 0
      %p423 = por %p421, %p422
      %p424 = scmp.ne.s32.totalorder %s412, %s413
      %p425 = scmp.eq.s32.totalorder %s43, 1
      %p426 = por %p424, %p425
      %p428 = scmp.ne.s32.totalorder %s413, %s427
      %p429 = scmp.eq.s32.totalorder %s43, 0
      %p430 = por %p428, %p429
      %s431 = ssub.s32 %s37, %s44
      %p432 = scmp.eq.s32.totalorder %s431, 0
      %s434 = sadd.s32 %s433, 1
      %s435 = scalar_select %p432, %s433, %s434
      %p438 = pneg %p432
      %p439 = scmp.eq.s32.totalorder %s37, 1
      %p440 = por %p438, %p439
      %p441 = scmp.ne.s32.totalorder %s433, %s436
      %p442 = scmp.eq.s32.totalorder %s37, 0
      %p443 = por %p441, %p442
      %p444 = scmp.ne.s32.totalorder %s433, %s436
      %p445 = scmp.eq.s32.totalorder %s42, 1
      %p446 = por %p444, %p445
      %p447 = scmp.ne.s32.totalorder %s436, %s437
      %p448 = scmp.eq.s32.totalorder %s42, 0
      %p449 = por %p447, %p448
      %p450 = scmp.ne.s32.totalorder %s436, %s437
      %p451 = scmp.eq.s32.totalorder %s43, 1
      %p452 = por %p450, %p451
      %p454 = scmp.ne.s32.totalorder %s437, %s453
      %p455 = scmp.eq.s32.totalorder %s43, 0
      %p456 = por %p454, %p455
      %p457 = scmp.le.s32.totalorder 1, %s37
      %p458 = scmp.lt.s32.totalorder %s37, 3
      %p459 = pnand %p457, %p458
      %p460 = pneg %p459
      // Predicated region
      $region9: #{tpu_custom_call.1} parent=5 // pred_check
        _
      $region10: #{tpu_custom_call.1} parent=5 // pred_check_branch
        %462 = sbr.rel (%p459) target = $region12
      $region11: #{tpu_custom_call.1} parent=5 // pred_region
        %s463 = ssub.s32 %s37, 1
        // Predicated region
        $region13: #{tpu_custom_call.1} parent=11 // pred_check
          %p464 = pneg %p318
        $region14: #{tpu_custom_call.1} parent=11 // pred_check_branch
          %466 = sbr.rel (%p464) target = $region16
        $region15: #{tpu_custom_call.1} parent=11 // pred_region
          _
        $region16: #{tpu_custom_call.1} parent=11 // pred_fallthru
          _
        // Predicated region
        $region17: #{tpu_custom_call.1} parent=11 // pred_check
          %p467 = pneg %p339
        $region18: #{tpu_custom_call.1} parent=11 // pred_check_branch
          %469 = sbr.rel (%p467) target = $region20
        $region19: #{tpu_custom_call.1} parent=11 // pred_region
          %s471 = ssub.s32 3072, 3072
          %472 = vsyncadd [#allocation13], %s471
          %s473 = sshll.u32 [#allocation14], 4
          %s474 = int_to_ptr.vmem [resolvable:$true] %s473
          %479 = dma.hbm_to_vmem [thread:$0]  %s11, 3072, %s474, [#allocation13], 64, 64, 4
        $region20: #{tpu_custom_call.1} parent=11 // pred_fallthru
          _
        // Predicated region
        $region21: #{tpu_custom_call.1} parent=11 // pred_check
          %p480 = pneg %p360
        $region22: #{tpu_custom_call.1} parent=11 // pred_check_branch
          %482 = sbr.rel (%p480) target = $region24
        $region23: #{tpu_custom_call.1} parent=11 // pred_region
          _
        $region24: #{tpu_custom_call.1} parent=11 // pred_fallthru
          _
        // Predicated region
        $region25: #{tpu_custom_call.1} parent=11 // pred_check
          %p483 = pneg %p381
        $region26: #{tpu_custom_call.1} parent=11 // pred_check_branch
          %485 = sbr.rel (%p483) target = $region28
        $region27: #{tpu_custom_call.1} parent=11 // pred_region
          _
        $region28: #{tpu_custom_call.1} parent=11 // pred_fallthru
          _
        // Predicated region
        $region29: #{tpu_custom_call.1} parent=11 // pred_check
          %p486 = pneg %p402
        $region30: #{tpu_custom_call.1} parent=11 // pred_check_branch
          %488 = sbr.rel (%p486) target = $region32
        $region31: #{tpu_custom_call.1} parent=11 // pred_region
          _
        $region32: #{tpu_custom_call.1} parent=11 // pred_fallthru
          _
        // Predicated region
        $region33: #{tpu_custom_call.1} parent=11 // pred_check
          %p489 = pneg %p423
        $region34: #{tpu_custom_call.1} parent=11 // pred_check_branch
          %491 = sbr.rel (%p489) target = $region36
        $region35: #{tpu_custom_call.1} parent=11 // pred_region
          _
        $region36: #{tpu_custom_call.1} parent=11 // pred_fallthru
          _
      $region12: #{tpu_custom_call.1} parent=5 // pred_fallthru
        _
      %p492 = scmp.lt.s32.totalorder %s37, 2
      // Predicated region
      $region37: #{tpu_custom_call.1} parent=5 // pred_check
        %p493 = pneg %p492
      $region38: #{tpu_custom_call.1} parent=5 // pred_check_branch
        %495 = sbr.rel (%p493) target = $region40
      $region39: #{tpu_custom_call.1} parent=5 // pred_region
        // Predicated region
        $region41: #{tpu_custom_call.1} parent=39 // pred_check
          %p496 = pneg %p57
        $region42: #{tpu_custom_call.1} parent=39 // pred_check_branch
          %498 = sbr.rel (%p496) target = $region44
        $region43: #{tpu_custom_call.1} parent=39 // pred_region
          %p499 = scmp.lt.s32.totalorder %s37, 1
          %s500 = scalar_select %p499, %s37, 1
          %s501 = smul.addr %s500, 2
          %s502 = smul.addr %s501, 8
          %s503 = scalar_lea.vmem %s0, %s502
        $region44: #{tpu_custom_call.1} parent=39 // pred_fallthru
          _
        // Predicated region
        $region45: #{tpu_custom_call.1} parent=39 // pred_check
          %p504 = pneg %p83
        $region46: #{tpu_custom_call.1} parent=39 // pred_check_branch
          %506 = sbr.rel (%p504) target = $region48
        $region47: #{tpu_custom_call.1} parent=39 // pred_region
          %p507 = scmp.lt.s32.totalorder %s37, 1
          %s508 = scalar_select %p507, %s37, 1
          %s509 = smul.addr %s508, 2
          %s510 = smul.addr %s509, 8
          %s511 = scalar_lea.vmem %s1, %s510
        $region48: #{tpu_custom_call.1} parent=39 // pred_fallthru
          _
        // Predicated region
        $region49: #{tpu_custom_call.1} parent=39 // pred_check
          %p512 = pneg %p109
        $region50: #{tpu_custom_call.1} parent=39 // pred_check_branch
          %514 = sbr.rel (%p512) target = $region52
        $region51: #{tpu_custom_call.1} parent=39 // pred_region
          %p515 = scmp.lt.s32.totalorder %s37, 1
          %s516 = scalar_select %p515, %s37, 1
          %s517 = smul.addr %s516, 2
          %s518 = smul.addr %s517, 8
          %s519 = scalar_lea.vmem %s2, %s518
        $region52: #{tpu_custom_call.1} parent=39 // pred_fallthru
          _
        // Predicated region
        $region53: #{tpu_custom_call.1} parent=39 // pred_check
          %p520 = pneg %p135
        $region54: #{tpu_custom_call.1} parent=39 // pred_check_branch
          %522 = sbr.rel (%p520) target = $region56
        $region55: #{tpu_custom_call.1} parent=39 // pred_region
          %p523 = scmp.lt.s32.totalorder %s37, 1
          %s524 = scalar_select %p523, %s37, 1
          %s525 = smul.addr %s524, 2
          %s526 = smul.addr %s525, 8
          %s527 = scalar_lea.vmem %s3, %s526
        $region56: #{tpu_custom_call.1} parent=39 // pred_fallthru
          _
        // Predicated region
        $region57: #{tpu_custom_call.1} parent=39 // pred_check
          %p528 = pneg %p161
        $region58: #{tpu_custom_call.1} parent=39 // pred_check_branch
          %530 = sbr.rel (%p528) target = $region60
        $region59: #{tpu_custom_call.1} parent=39 // pred_region
          %s531 = sand.u32 %s151, 1
          %s532 = scalar_lea.sflag [#allocation4], %s531
          %s533 = sand.u32 %s151, 1
          %s534 = smul.addr %s533, 16
          %s535 = scalar_lea.vmem [#allocation3], %s534
          %s537 = ssub.s32 256, 256
          %538 = vsyncadd %s532, %s537
          %s539 = smul.addr %s37, 2
          %s540 = smul.addr %s539, 128
          %s541 = scalar_lea.hbm %s4, %s540
          %s542 = sshll.u32 %s535, 4
          %s543 = int_to_ptr.vmem [resolvable:$true] %s542
          %548 = dma.hbm_to_vmem [thread:$0]  %s541, 256, %s543, %s532, 128, 128, 8
        $region60: #{tpu_custom_call.1} parent=39 // pred_fallthru
          _
        // Predicated region
        $region61: #{tpu_custom_call.1} parent=39 // pred_check
          %p549 = pneg %p187
        $region62: #{tpu_custom_call.1} parent=39 // pred_check_branch
          %551 = sbr.rel (%p549) target = $region64
        $region63: #{tpu_custom_call.1} parent=39 // pred_region
          %s552 = sand.u32 %s37, 1
          %s553 = scalar_lea.sflag [#allocation7], %s552
          %s554 = sand.u32 %s177, 1
          %s555 = smul.addr %s554, 16
          %s556 = scalar_lea.vmem [#allocation6], %s555
          %s558 = ssub.s32 256, 256
          %559 = vsyncadd %s553, %s558
          %s560 = smul.addr %s37, 2
          %s561 = smul.addr %s560, 128
          %s562 = scalar_lea.hbm %s5, %s561
          %s563 = sshll.u32 %s556, 4
          %s564 = int_to_ptr.vmem [resolvable:$true] %s563
          %569 = dma.hbm_to_vmem [thread:$0]  %s562, 256, %s564, %s553, 128, 128, 8
        $region64: #{tpu_custom_call.1} parent=39 // pred_fallthru
          _
        // Predicated region
        $region65: #{tpu_custom_call.1} parent=39 // pred_check
          %p570 = pneg %p213
        $region66: #{tpu_custom_call.1} parent=39 // pred_check_branch
          %572 = sbr.rel (%p570) target = $region68
        $region67: #{tpu_custom_call.1} parent=39 // pred_region
          %s573 = sand.u32 %s37, 1
          %s574 = scalar_lea.sflag [#allocation7], %s573
          %s575 = sand.u32 %s203, 1
          %s576 = smul.addr %s575, 16
          %s577 = scalar_lea.vmem [#allocation8], %s576
          %s579 = ssub.s32 256, 256
          %580 = vsyncadd %s574, %s579
          %s581 = smul.addr %s37, 2
          %s582 = smul.addr %s581, 128
          %s583 = scalar_lea.hbm %s6, %s582
          %s584 = sshll.u32 %s577, 4
          %s585 = int_to_ptr.vmem [resolvable:$true] %s584
          %590 = dma.hbm_to_vmem [thread:$0]  %s583, 256, %s585, %s574, 128, 128, 8
        $region68: #{tpu_custom_call.1} parent=39 // pred_fallthru
          _
        // Predicated region
        $region69: #{tpu_custom_call.1} parent=39 // pred_check
          %p591 = pneg %p239
        $region70: #{tpu_custom_call.1} parent=39 // pred_check_branch
          %593 = sbr.rel (%p591) target = $region72
        $region71: #{tpu_custom_call.1} parent=39 // pred_region
          %s594 = sand.u32 %s37, 1
          %s595 = scalar_lea.sflag [#allocation10], %s594
          %s596 = sand.u32 %s229, 1
          %s597 = smul.addr %s596, 16
          %s598 = scalar_lea.vmem [#allocation9], %s597
          %s600 = ssub.s32 256, 256
          %601 = vsyncadd %s595, %s600
          %s602 = smul.addr %s37, 2
          %s603 = smul.addr %s602, 128
          %s604 = scalar_lea.hbm %s7, %s603
          %s605 = sshll.u32 %s598, 4
          %s606 = int_to_ptr.vmem [resolvable:$true] %s605
          %611 = dma.hbm_to_vmem [thread:$0]  %s604, 256, %s606, %s595, 128, 128, 8
        $region72: #{tpu_custom_call.1} parent=39 // pred_fallthru
          _
        // Predicated region
        $region73: #{tpu_custom_call.1} parent=39 // pred_check
          %p612 = pneg %p265
        $region74: #{tpu_custom_call.1} parent=39 // pred_check_branch
          %614 = sbr.rel (%p612) target = $region76
        $region75: #{tpu_custom_call.1} parent=39 // pred_region
          %s615 = sand.u32 %s37, 1
          %s616 = scalar_lea.sflag [#allocation10], %s615
          %s617 = sand.u32 %s255, 1
          %s618 = smul.addr %s617, 16
          %s619 = scalar_lea.vmem [#allocation11], %s618
          %s621 = ssub.s32 256, 256
          %622 = vsyncadd %s616, %s621
          %s623 = smul.addr %s37, 2
          %s624 = smul.addr %s623, 128
          %s625 = scalar_lea.hbm %s8, %s624
          %s626 = sshll.u32 %s619, 4
          %s627 = int_to_ptr.vmem [resolvable:$true] %s626
          %632 = dma.hbm_to_vmem [thread:$0]  %s625, 256, %s627, %s616, 128, 128, 8
        $region76: #{tpu_custom_call.1} parent=39 // pred_fallthru
          _
        // Predicated region
        $region77: #{tpu_custom_call.1} parent=39 // pred_check
          %p633 = pneg %p291
        $region78: #{tpu_custom_call.1} parent=39 // pred_check_branch
          %635 = sbr.rel (%p633) target = $region80
        $region79: #{tpu_custom_call.1} parent=39 // pred_region
          %s636 = sand.u32 %s37, 1
          %s637 = scalar_lea.sflag [#allocation13], %s636
          %s638 = sand.u32 %s281, 1
          %s639 = smul.addr %s638, 16
          %s640 = scalar_lea.vmem [#allocation12], %s639
          %s642 = ssub.s32 256, 256
          %643 = vsyncadd %s637, %s642
          %s644 = smul.addr %s37, 2
          %s645 = smul.addr %s644, 128
          %s646 = scalar_lea.hbm %s9, %s645
          %s647 = sshll.u32 %s640, 4
          %s648 = int_to_ptr.vmem [resolvable:$true] %s647
          %653 = dma.hbm_to_vmem [thread:$0]  %s646, 256, %s648, %s637, 128, 128, 8
        $region80: #{tpu_custom_call.1} parent=39 // pred_fallthru
          _
      $region40: #{tpu_custom_call.1} parent=5 // pred_fallthru
        _
      %p654 = scmp.le.s32.totalorder 1, %s37
      %p655 = scmp.lt.s32.totalorder %s37, 3
      %p656 = pnand %p654, %p655
      %p657 = pneg %p656
      // Predicated region
      $region81: #{tpu_custom_call.1} parent=5 // pred_check
        _
      $region82: #{tpu_custom_call.1} parent=5 // pred_check_branch
        %659 = sbr.rel (%p656) target = $region84
      $region83: #{tpu_custom_call.1} parent=5 // pred_region
        %s660 = ssub.s32 %s37, 1
        %s661 = sand.u32 %s154, 1
        %s662 = scalar_lea.sflag [#allocation4], %s661
        %s663 = sand.u32 %s154, 1
        %s664 = smul.addr %s663, 16
        %s665 = scalar_lea.vmem [#allocation3], %s664
        // Predicated region
        $region85: #{tpu_custom_call.1} parent=83 // pred_check
          %p666 = pneg %p167
        $region86: #{tpu_custom_call.1} parent=83 // pred_check_branch
          %668 = sbr.rel (%p666) target = $region88
        $region87: #{tpu_custom_call.1} parent=83 // pred_region
          %669 = dma.done %s662, 256
        $region88: #{tpu_custom_call.1} parent=83 // pred_fallthru
          _
        %s670 = sand.u32 %s42, 1
        %s671 = scalar_lea.sflag [#allocation7], %s670
        %s672 = sand.u32 %s180, 1
        %s673 = smul.addr %s672, 16
        %s674 = scalar_lea.vmem [#allocation6], %s673
        // Predicated region
        $region89: #{tpu_custom_call.1} parent=83 // pred_check
          %p675 = pneg %p193
        $region90: #{tpu_custom_call.1} parent=83 // pred_check_branch
          %677 = sbr.rel (%p675) target = $region92
        $region91: #{tpu_custom_call.1} parent=83 // pred_region
          %678 = dma.done %s671, 256
        $region92: #{tpu_custom_call.1} parent=83 // pred_fallthru
          _
        %s679 = sand.u32 %s42, 1
        %s680 = scalar_lea.sflag [#allocation7], %s679
        %s681 = sand.u32 %s206, 1
        %s682 = smul.addr %s681, 16
        %s683 = scalar_lea.vmem [#allocation8], %s682
        // Predicated region
        $region93: #{tpu_custom_call.1} parent=83 // pred_check
          %p684 = pneg %p219
        $region94: #{tpu_custom_call.1} parent=83 // pred_check_branch
          %686 = sbr.rel (%p684) target = $region96
        $region95: #{tpu_custom_call.1} parent=83 // pred_region
          %687 = dma.done %s680, 256
        $region96: #{tpu_custom_call.1} parent=83 // pred_fallthru
          _
        %s688 = sand.u32 %s42, 1
        %s689 = scalar_lea.sflag [#allocation10], %s688
        %s690 = sand.u32 %s232, 1
        %s691 = smul.addr %s690, 16
        %s692 = scalar_lea.vmem [#allocation9], %s691
        // Predicated region
        $region97: #{tpu_custom_call.1} parent=83 // pred_check
          %p693 = pneg %p245
        $region98: #{tpu_custom_call.1} parent=83 // pred_check_branch
          %695 = sbr.rel (%p693) target = $region100
        $region99: #{tpu_custom_call.1} parent=83 // pred_region
          %696 = dma.done %s689, 256
        $region100: #{tpu_custom_call.1} parent=83 // pred_fallthru
          _
        %s697 = sand.u32 %s42, 1
        %s698 = scalar_lea.sflag [#allocation10], %s697
        %s699 = sand.u32 %s258, 1
        %s700 = smul.addr %s699, 16
        %s701 = scalar_lea.vmem [#allocation11], %s700
        // Predicated region
        $region101: #{tpu_custom_call.1} parent=83 // pred_check
          %p702 = pneg %p271
        $region102: #{tpu_custom_call.1} parent=83 // pred_check_branch
          %704 = sbr.rel (%p702) target = $region104
        $region103: #{tpu_custom_call.1} parent=83 // pred_region
          %705 = dma.done %s698, 256
        $region104: #{tpu_custom_call.1} parent=83 // pred_fallthru
          _
        %s706 = sand.u32 %s42, 1
        %s707 = scalar_lea.sflag [#allocation13], %s706
        %s708 = sand.u32 %s284, 1
        %s709 = smul.addr %s708, 16
        %s710 = scalar_lea.vmem [#allocation12], %s709
        // Predicated region
        $region105: #{tpu_custom_call.1} parent=83 // pred_check
          %p711 = pneg %p297
        $region106: #{tpu_custom_call.1} parent=83 // pred_check_branch
          %713 = sbr.rel (%p711) target = $region108
        $region107: #{tpu_custom_call.1} parent=83 // pred_region
          %714 = dma.done %s707, 256
        $region108: #{tpu_custom_call.1} parent=83 // pred_fallthru
          _
        // Predicated region
        $region109: #{tpu_custom_call.1} parent=83 // pred_check
          %p715 = pneg %p339
        $region110: #{tpu_custom_call.1} parent=83 // pred_check_branch
          %717 = sbr.rel (%p715) target = $region112
        $region111: #{tpu_custom_call.1} parent=83 // pred_region
          %718 = dma.done [#allocation13], 3072
        $region112: #{tpu_custom_call.1} parent=83 // pred_fallthru
          _
        %p719 = scmp.lt.s32.totalorder %s42, 1
        %s720 = scalar_select %p719, %s42, 1
        %s721 = smul.addr %s720, 2
        %s722 = smul.addr %s721, 8
        %s723 = scalar_lea.vmem %s0, %s722
        %p724 = pneg %p63
        %p725 = pneg %p60
        %p726 = scmp.lt.s32.totalorder %s42, 1
        %s727 = scalar_select %p726, %s42, 1
        %s728 = smul.addr %s727, 2
        %s729 = smul.addr %s728, 8
        %s730 = scalar_lea.vmem %s1, %s729
        %p731 = pneg %p89
        %p732 = pneg %p86
        %p733 = scmp.lt.s32.totalorder %s42, 1
        %s734 = scalar_select %p733, %s42, 1
        %s735 = smul.addr %s734, 2
        %s736 = smul.addr %s735, 8
        %s737 = scalar_lea.vmem %s2, %s736
        %p738 = pneg %p115
        %p739 = pneg %p112
        %p740 = scmp.lt.s32.totalorder %s42, 1
        %s741 = scalar_select %p740, %s42, 1
        %s742 = smul.addr %s741, 2
        %s743 = smul.addr %s742, 8
        %s744 = scalar_lea.vmem %s3, %s743
        %p745 = pneg %p141
        %p746 = pneg %p138
        %s747 = sand.u32 %s154, 1
        %s748 = scalar_lea.sflag [#allocation4], %s747
        %s749 = sand.u32 %s154, 1
        %s750 = smul.addr %s749, 16
        %s751 = scalar_lea.vmem [#allocation3], %s750
        %p752 = pneg %p167
        %p753 = pneg %p164
        %s754 = sand.u32 %s42, 1
        %s755 = scalar_lea.sflag [#allocation7], %s754
        %s756 = sand.u32 %s180, 1
        %s757 = smul.addr %s756, 16
        %s758 = scalar_lea.vmem [#allocation6], %s757
        %p759 = pneg %p193
        %p760 = pneg %p190
        %s761 = sand.u32 %s42, 1
        %s762 = scalar_lea.sflag [#allocation7], %s761
        %s763 = sand.u32 %s206, 1
        %s764 = smul.addr %s763, 16
        %s765 = scalar_lea.vmem [#allocation8], %s764
        %p766 = pneg %p219
        %p767 = pneg %p216
        %s768 = sand.u32 %s42, 1
        %s769 = scalar_lea.sflag [#allocation10], %s768
        %s770 = sand.u32 %s232, 1
        %s771 = smul.addr %s770, 16
        %s772 = scalar_lea.vmem [#allocation9], %s771
        %p773 = pneg %p245
        %p774 = pneg %p242
        %s775 = sand.u32 %s42, 1
        %s776 = scalar_lea.sflag [#allocation10], %s775
        %s777 = sand.u32 %s258, 1
        %s778 = smul.addr %s777, 16
        %s779 = scalar_lea.vmem [#allocation11], %s778
        %p780 = pneg %p271
        %p781 = pneg %p268
        %s782 = sand.u32 %s42, 1
        %s783 = scalar_lea.sflag [#allocation13], %s782
        %s784 = sand.u32 %s284, 1
        %s785 = smul.addr %s784, 16
        %s786 = scalar_lea.vmem [#allocation12], %s785
        %p787 = pneg %p297
        %p788 = pneg %p294
        %p789 = pneg %p318
        %p790 = pneg %p315
        %p791 = pneg %p339
        %p792 = pneg %p336
        %p793 = pneg %p360
        %p794 = pneg %p357
        %p795 = pneg %p381
        %p796 = pneg %p378
        %p797 = pneg %p402
        %p798 = pneg %p399
        %p799 = pneg %p423
        %p800 = pneg %p420
        %p801 = pneg %p449
        %p802 = pneg %p446
        %s803 = sand.u32 %s436, 1
        %s804 = scalar_lea.sflag [#allocation5], %s803
        %s805 = sand.u32 %s436, 1
        %s806 = smul.addr %s805, 16
        %s807 = scalar_lea.vmem [#allocation15], %s806
        %p808 = scmp.lt.s32.totalorder %s42, 1
        %s809 = scalar_select %p808, %s42, 1
        %s810 = smul.addr %s809, 2
        %s811 = smul.addr %s810, 8
        %s812 = scalar_lea.vmem %s0, %s811
        %p813 = scmp.lt.s32.totalorder %s42, 1
        %s814 = scalar_select %p813, %s42, 1
        %s815 = smul.addr %s814, 2
        %s816 = smul.addr %s815, 8
        %s817 = scalar_lea.vmem %s1, %s816
        %p818 = scmp.lt.s32.totalorder %s42, 1
        %s819 = scalar_select %p818, %s42, 1
        %s820 = smul.addr %s819, 2
        %s821 = smul.addr %s820, 8
        %s822 = scalar_lea.vmem %s2, %s821
        %p823 = scmp.lt.s32.totalorder %s42, 1
        %s824 = scalar_select %p823, %s42, 1
        %s825 = smul.addr %s824, 2
        %s826 = smul.addr %s825, 8
        %s827 = scalar_lea.vmem %s3, %s826
        %vm829 = vcmask 1040384
        %vm830 = vsmask.f32 256
        %vm831 = vmand %vm829, %vm830
        %v832 = vld [vmem:[#allocation2] sm:$0x1]
        %v833 = vsel %vm831, 0, %v832
        %834 = vst [vmem:[#allocation2] sm:$0x1] %v833
        %vm835 = vsmask.f32 7938
        %vm836 = vmand %vm829, %vm835
        %v837 = vld [vmem:[#allocation2 + $0x8] sm:$0x1]
        %v838 = vsel %vm836, 0, %v837
        %839 = vst [vmem:[#allocation2 + $0x8] sm:$0x1] %v838
        %v840 = vld [vmem:[%s812] sm:$0xff]
        %v841 = vld [vmem:[%s812 + $0x8] sm:$0xff]
        %v842 = vld [vmem:[%s817] sm:$0xff]
        %v843 = vld [vmem:[%s817 + $0x8] sm:$0xff]
        %v844 = vld [vmem:[%s822] sm:$0xff]
        %v845 = vld [vmem:[%s822 + $0x8] sm:$0xff]
        %v846 = vld [vmem:[%s827] sm:$0xff]
        %v847 = vld [vmem:[%s827 + $0x8] sm:$0xff]
        %v848 = vld [vmem:[%s13] sm:$0x1]
        %v849 = vmul.f32 %v840, %v844
        %v850 = vmul.f32 %v841, %v845
        %v852 = vlaneseq
        %v853 = vshrl.u32 %v852, 7
        %v854 = vsub.s32 0, %v853
        %v855 = vrot.slane %v848, %v854
        %v857 = vmul.f32 %v849, %v855
        %v858 = vmul.f32 %v850, %v855
        %vm859 = vcmp.ge.f32.partialorder %v846, 0.0
        %vm860 = vcmp.ge.f32.partialorder %v847, 0.0
        %v861 = vsel %vm859, 1.0, -1.0
        %v862 = vsel %vm860, 1.0, -1.0
        %v863 = vmul.f32 %v861, 0.01
        %v864 = vmul.f32 %v862, 0.01
        %v865 = vadd.f32 %v846, %v863
        %v866 = vadd.f32 %v847, %v864
        %vm867 = vcmp.ge.f32.partialorder %v844, 0.0
        %vm868 = vcmp.ge.f32.partialorder %v845, 0.0
        %v869 = vsel %vm867, 1.0, -1.0
        %v870 = vsel %vm868, 1.0, -1.0
        %v871 = vmul.f32 %v869, 0.01
        %v872 = vmul.f32 %v870, 0.01
        %v873 = vadd.f32 %v844, %v871
        %v874 = vadd.f32 %v845, %v872
        %v875 = vmul.f32 %v865, %v873
        %v876 = vmul.f32 %v866, %v874
        %v877 = vrcp.pop %v875
        %v878 = vmul.f32 %v857, %v877
        %v879 = vrcp.pop %v876
        %v880 = vmul.f32 %v858, %v879
        %v881 = vpack.c.bf16 %v880, %v878
        %v883 = vunpack.c.l.b16 %v881
        %v884 = vunpack.c.h.b16 %v881
        %v885 = vpack.c.b16 %v883, %v883
        %v886 = vpack.c.b16 %v884, %v884
        %vm887 = vsmask.f32 4368
        %vm888 = vmor %vm830, %vm887
        %v890 = vshrl.u32 %v885, 16
        %v892 = vrot.slane %v890, 7
        %v893 = vshll.u32 %v885, 16
        %v895 = vor.u32 %v892, %v893
        %v896 = vrot.slane %v892, 4
        %v898 = vshrl.u32 %v886, 16
        %v900 = vrot.slane %v898, 7
        %v901 = vshll.u32 %v886, 16
        %v903 = vor.u32 %v900, %v901
        %v904 = vsel %vm888, %v896, %v903
        %v905 = vrot.slane %v900, 4
        %vm909 = vcmask 1043456
        %vm910 = vmand %vm909, %vm835
        %v911 = vld [vmem:[#allocation2] sm:$0xf]
        %v912 = vsel %vm910, %v895, %v911
        %913 = vst [vmem:[#allocation2] sm:$0xf] %v912
        %914 = vst [vmem:[#allocation2 + $0x4] sm:$0xf] %v904
        %v915 = vld [vmem:[#allocation2 + $0x8] sm:$0x1]
        %v916 = vsel %vm831, %v905, %v915
        %917 = vst [vmem:[#allocation2 + $0x8] sm:$0x1] %v916
        %v918 = vld [vmem:[#allocation2] sm:$0xf]
        %v919 = vld [vmem:[#allocation2 + $0x4] sm:$0xf]
        %v920 = vld [vmem:[%s10] sm:$0xf]
        %v921 = vld [vmem:[%s10 + $0x4] sm:$0xf]
        %v922 = vld [vmem:[%s10 + $0x8] sm:$0xf]
        %v923 = vld [vmem:[%s10 + $0xc] sm:$0xf]
        %v924 = vld [vmem:[%s10 + $0x10] sm:$0xf]
        %v925 = vld [vmem:[%s10 + $0x14] sm:$0xf]
        %v926 = vld [vmem:[%s10 + $0x18] sm:$0xf]
        %v927 = vld [vmem:[%s10 + $0x1c] sm:$0xf]
        %v928 = vld [vmem:[%s10 + $0x20] sm:$0xf]
        %v929 = vld [vmem:[%s10 + $0x24] sm:$0xf]
        %v930 = vld [vmem:[%s10 + $0x28] sm:$0xf]
        %v931 = vld [vmem:[%s10 + $0x2c] sm:$0xf]
        %v932 = vld [vmem:[%s10 + $0x30] sm:$0xf]
        %v933 = vld [vmem:[%s10 + $0x34] sm:$0xf]
        %v934 = vld [vmem:[%s10 + $0x38] sm:$0xf]
        %v935 = vld [vmem:[%s10 + $0x3c] sm:$0xf]
        %v936 = vld [vmem:[#allocation2 + $0x8] sm:$0x1]
        %s937 = scalar_lea.vmem %s10, 64
        %v938 = vld [vmem:[%s937] sm:$0xf]
        %v939 = vld [vmem:[%s937 + $0x4] sm:$0xf]
        %v940 = vld [vmem:[%s937 + $0x8] sm:$0xf]
        %v941 = vld [vmem:[%s937 + $0xc] sm:$0xf]
        %v942 = vld [vmem:[%s937 + $0x10] sm:$0xf]
        %v943 = vld [vmem:[%s937 + $0x14] sm:$0xf]
        %v944 = vld [vmem:[%s937 + $0x18] sm:$0xf]
        %v945 = vld [vmem:[%s937 + $0x1c] sm:$0xf]
        %v946 = vld [vmem:[%s937 + $0x20] sm:$0xf]
        %v947 = vld [vmem:[%s937 + $0x24] sm:$0xf]
        %v948 = vld [vmem:[%s937 + $0x28] sm:$0xf]
        %v949 = vld [vmem:[%s937 + $0x2c] sm:$0xf]
        %v950 = vld [vmem:[%s937 + $0x30] sm:$0xf]
        %v951 = vld [vmem:[%s937 + $0x34] sm:$0xf]
        %v952 = vld [vmem:[%s937 + $0x38] sm:$0xf]
        %v953 = vld [vmem:[%s937 + $0x3c] sm:$0xf]
        %v957 = vunpack.c.l.b16 %v918
        %v958 = vunpack.c.l.b16 %v919
        %v959 = vunpack.c.l.b16 %v936
        %v960 = vpack.c.b16 %v958, %v957
        %v961 = vpack.c.b16 %v959, %v959
        %vm962 = vsmask.f32 7424
        %v964 = vshrl.u32 %v960, 16
        %v966 = vshll.u32 %v960, 16
        %v968 = vrot.slane %v966, 1
        %v969 = vor.u32 %v964, %v968
        %v971 = vshll.u32 %v961, 16
        %v973 = vrot.slane %v971, 1
        %v974 = vsel %vm962, %v969, %v973
        %v992 = vunpack.c.l.b16 %v938
        %v993 = vunpack.c.l.b16 %v939
        %v994 = vunpack.c.l.b16 %v940
        %v995 = vunpack.c.l.b16 %v941
        %v996 = vunpack.c.l.b16 %v942
        %v997 = vunpack.c.l.b16 %v943
        %v998 = vunpack.c.l.b16 %v944
        %v999 = vunpack.c.l.b16 %v945
        %v1000 = vunpack.c.l.b16 %v946
        %v1001 = vunpack.c.l.b16 %v947
        %v1002 = vunpack.c.l.b16 %v948
        %v1003 = vunpack.c.l.b16 %v949
        %v1004 = vunpack.c.l.b16 %v950
        %v1005 = vunpack.c.l.b16 %v951
        %v1006 = vunpack.c.l.b16 %v952
        %v1007 = vunpack.c.l.b16 %v953
        %v1008 = vpack.c.b16 %v993, %v992
        %v1009 = vpack.c.b16 %v995, %v994
        %v1010 = vpack.c.b16 %v997, %v996
        %v1011 = vpack.c.b16 %v999, %v998
        %v1012 = vpack.c.b16 %v1001, %v1000
        %v1013 = vpack.c.b16 %v1003, %v1002
        %v1014 = vpack.c.b16 %v1005, %v1004
        %v1015 = vpack.c.b16 %v1007, %v1006
        %1024 = vmatprep.subr.bf16.mxu0 0
        %1025 = vmatpush1.bf16.msra.mxu0 %v1008
        %1026 = vmatprep.subr.bf16.mxu0 0
        %1027 = vmatpush1.bf16.msra.mxu0 %v1009
        %1028 = vmatprep.subr.bf16.mxu0 0
        %1029 = vmatpush1.bf16.msra.mxu0 %v1010
        %1030 = vmatprep.subr.bf16.mxu0 0
        %1031 = vmatpush1.bf16.msra.mxu0 %v1011
        %1032 = vmatprep.subr.bf16.mxu0 0
        %1033 = vmatpush1.bf16.msra.mxu0 %v1012
        %1034 = vmatprep.subr.bf16.mxu0 0
        %1035 = vmatpush1.bf16.msra.mxu0 %v1013
        %1036 = vmatprep.subr.bf16.mxu0 0
        %1037 = vmatpush1.bf16.msra.mxu0 %v1014
        %1038 = vmatprep.subr.bf16.mxu0 0
        %1039 = vmatpush1.bf16.msra.mxu0 %v1015
        %1040 = vmatprep.subr.bf16.mxu0 0
        %1041 = vmatpush1.bf16.msra.mxu0 0
        %1042 = vmatprep.subr.bf16.mxu0 0
        %1043 = vmatpush1.bf16.msra.mxu0 0
        %1044 = vmatprep.subr.bf16.mxu0 0
        %1045 = vmatpush1.bf16.msra.mxu0 0
        %1046 = vmatprep.subr.bf16.mxu0 0
        %1047 = vmatpush1.bf16.msra.mxu0 0
        %1048 = vmatprep.subr.bf16.mxu0 0
        %1049 = vmatpush1.bf16.msra.mxu0 0
        %1050 = vmatprep.subr.bf16.mxu0 0
        %1051 = vmatpush1.bf16.msra.mxu0 0
        %1052 = vmatprep.subr.bf16.mxu0 0
        %1053 = vmatpush1.bf16.msra.mxu0 0
        %1054 = vmatprep.subr.bf16.mxu0 0
        %1055 = vmatpush1.bf16.msra.mxu0 0
        %1056 = vmatprep.mubr.bf16.mxu0 0
        %1057 = vmatmul.mubr.bf16.gmra.mrb[0].mxu0 %v974
        %v1058 = vpop.f32.mrb[0].mxu0
        %v1059 = vadd.f32 0.0, %v1058
        %v1060 = vpop.f32.mrb[0].mxu0
        %v1061 = vpop.f32.mrb[0].mxu0
        %v1062 = vadd.f32 0.0, %v1061
        %v1063 = vpop.f32.mrb[0].mxu0
        %1064 = vdwg.mxu0
        %v1082 = vunpack.c.l.b16 %v920
        %v1083 = vunpack.c.l.b16 %v921
        %v1084 = vunpack.c.l.b16 %v922
        %v1085 = vunpack.c.l.b16 %v923
        %v1086 = vunpack.c.l.b16 %v924
        %v1087 = vunpack.c.l.b16 %v925
        %v1088 = vunpack.c.l.b16 %v926
        %v1089 = vunpack.c.l.b16 %v927
        %v1090 = vunpack.c.l.b16 %v928
        %v1091 = vunpack.c.l.b16 %v929
        %v1092 = vunpack.c.l.b16 %v930
        %v1093 = vunpack.c.l.b16 %v931
        %v1094 = vunpack.c.l.b16 %v932
        %v1095 = vunpack.c.l.b16 %v933
        %v1096 = vunpack.c.l.b16 %v934
        %v1097 = vunpack.c.l.b16 %v935
        %v1098 = vpack.c.b16 %v1083, %v1082
        %v1099 = vpack.c.b16 %v1085, %v1084
        %v1100 = vpack.c.b16 %v1087, %v1086
        %v1101 = vpack.c.b16 %v1089, %v1088
        %v1102 = vpack.c.b16 %v1091, %v1090
        %v1103 = vpack.c.b16 %v1093, %v1092
        %v1104 = vpack.c.b16 %v1095, %v1094
        %v1105 = vpack.c.b16 %v1097, %v1096
        %1114 = vmatprep.subr.bf16.mxu0 0
        %1115 = vmatpush1.bf16.msra.mxu0 %v1098
        %1116 = vmatprep.subr.bf16.mxu0 0
        %1117 = vmatpush1.bf16.msra.mxu0 %v1099
        %1118 = vmatprep.subr.bf16.mxu0 0
        %1119 = vmatpush1.bf16.msra.mxu0 %v1100
        %1120 = vmatprep.subr.bf16.mxu0 0
        %1121 = vmatpush1.bf16.msra.mxu0 %v1101
        %1122 = vmatprep.subr.bf16.mxu0 0
        %1123 = vmatpush1.bf16.msra.mxu0 %v1102
        %1124 = vmatprep.subr.bf16.mxu0 0
        %1125 = vmatpush1.bf16.msra.mxu0 %v1103
        %1126 = vmatprep.subr.bf16.mxu0 0
        %1127 = vmatpush1.bf16.msra.mxu0 %v1104
        %1128 = vmatprep.subr.bf16.mxu0 0
        %1129 = vmatpush1.bf16.msra.mxu0 %v1105
        %1130 = vmatprep.subr.bf16.mxu0 0
        %1131 = vmatpush1.bf16.msra.mxu0 0
        %1132 = vmatprep.subr.bf16.mxu0 0
        %1133 = vmatpush1.bf16.msra.mxu0 0
        %1134 = vmatprep.subr.bf16.mxu0 0
        %1135 = vmatpush1.bf16.msra.mxu0 0
        %1136 = vmatprep.subr.bf16.mxu0 0
        %1137 = vmatpush1.bf16.msra.mxu0 0
        %1138 = vmatprep.subr.bf16.mxu0 0
        %1139 = vmatpush1.bf16.msra.mxu0 0
        %1140 = vmatprep.subr.bf16.mxu0 0
        %1141 = vmatpush1.bf16.msra.mxu0 0
        %1142 = vmatprep.subr.bf16.mxu0 0
        %1143 = vmatpush1.bf16.msra.mxu0 0
        %1144 = vmatprep.subr.bf16.mxu0 0
        %1145 = vmatpush1.bf16.msra.mxu0 0
        %1146 = vmatprep.mubr.bf16.mxu0 0
        %1147 = vmatmul.mubr.bf16.gmra.mrb[0].mxu0 %v960
        %v1148 = vpop.f32.mrb[0].mxu0
        %v1149 = vadd.f32 %v1059, %v1148
        %v1150 = vpop.f32.mrb[0].mxu0
        %v1151 = vpop.f32.mrb[0].mxu0
        %v1152 = vadd.f32 %v1062, %v1151
        %v1153 = vpop.f32.mrb[0].mxu0
        %1154 = vdwg.mxu0
        %v1155 = vld [vmem:[#allocation2] sm:$0xe]
        %s1156 = scalar_lea.vmem %s10, 128
        %v1157 = vld [vmem:[%s1156] sm:$0xf]
        %v1158 = vld [vmem:[%s1156 + $0x4] sm:$0xf]
        %v1159 = vld [vmem:[%s1156 + $0x8] sm:$0xf]
        %v1160 = vld [vmem:[%s1156 + $0xc] sm:$0xf]
        %v1161 = vld [vmem:[%s1156 + $0x10] sm:$0xf]
        %v1162 = vld [vmem:[%s1156 + $0x14] sm:$0xf]
        %v1163 = vld [vmem:[%s1156 + $0x18] sm:$0xf]
        %v1164 = vld [vmem:[%s1156 + $0x1c] sm:$0xf]
        %v1165 = vld [vmem:[%s1156 + $0x20] sm:$0xf]
        %v1166 = vld [vmem:[%s1156 + $0x24] sm:$0xf]
        %v1167 = vld [vmem:[%s1156 + $0x28] sm:$0xf]
        %v1168 = vld [vmem:[%s1156 + $0x2c] sm:$0xf]
        %v1169 = vld [vmem:[%s1156 + $0x30] sm:$0xf]
        %v1170 = vld [vmem:[%s1156 + $0x34] sm:$0xf]
        %v1171 = vld [vmem:[%s1156 + $0x38] sm:$0xf]
        %v1172 = vld [vmem:[%s1156 + $0x3c] sm:$0xf]
        %v1174 = vunpack.c.l.b16 %v1155
        %v1175 = vpack.c.b16 %v958, %v1174
        %vm1176 = vcmask 1046528
        %v1177 = vrot.slane %v1175, 1
        %v1178 = vrot.slane %v961, 1
        %v1179 = vsel %vm1176, %v1177, %v1178
        %v1197 = vunpack.c.l.b16 %v1157
        %v1198 = vunpack.c.l.b16 %v1158
        %v1199 = vunpack.c.l.b16 %v1159
        %v1200 = vunpack.c.l.b16 %v1160
        %v1201 = vunpack.c.l.b16 %v1161
        %v1202 = vunpack.c.l.b16 %v1162
        %v1203 = vunpack.c.l.b16 %v1163
        %v1204 = vunpack.c.l.b16 %v1164
        %v1205 = vunpack.c.l.b16 %v1165
        %v1206 = vunpack.c.l.b16 %v1166
        %v1207 = vunpack.c.l.b16 %v1167
        %v1208 = vunpack.c.l.b16 %v1168
        %v1209 = vunpack.c.l.b16 %v1169
        %v1210 = vunpack.c.l.b16 %v1170
        %v1211 = vunpack.c.l.b16 %v1171
        %v1212 = vunpack.c.l.b16 %v1172
        %v1213 = vpack.c.b16 %v1198, %v1197
        %v1214 = vpack.c.b16 %v1200, %v1199
        %v1215 = vpack.c.b16 %v1202, %v1201
        %v1216 = vpack.c.b16 %v1204, %v1203
        %v1217 = vpack.c.b16 %v1206, %v1205
        %v1218 = vpack.c.b16 %v1208, %v1207
        %v1219 = vpack.c.b16 %v1210, %v1209
        %v1220 = vpack.c.b16 %v1212, %v1211
        %1229 = vmatprep.subr.bf16.mxu0 0
        %1230 = vmatpush1.bf16.msra.mxu0 %v1213
        %1231 = vmatprep.subr.bf16.mxu0 0
        %1232 = vmatpush1.bf16.msra.mxu0 %v1214
        %1233 = vmatprep.subr.bf16.mxu0 0
        %1234 = vmatpush1.bf16.msra.mxu0 %v1215
        %1235 = vmatprep.subr.bf16.mxu0 0
        %1236 = vmatpush1.bf16.msra.mxu0 %v1216
        %1237 = vmatprep.subr.bf16.mxu0 0
        %1238 = vmatpush1.bf16.msra.mxu0 %v1217
        %1239 = vmatprep.subr.bf16.mxu0 0
        %1240 = vmatpush1.bf16.msra.mxu0 %v1218
        %1241 = vmatprep.subr.bf16.mxu0 0
        %1242 = vmatpush1.bf16.msra.mxu0 %v1219
        %1243 = vmatprep.subr.bf16.mxu0 0
        %1244 = vmatpush1.bf16.msra.mxu0 %v1220
        %1245 = vmatprep.subr.bf16.mxu0 0
        %1246 = vmatpush1.bf16.msra.mxu0 0
        %1247 = vmatprep.subr.bf16.mxu0 0
        %1248 = vmatpush1.bf16.msra.mxu0 0
        %1249 = vmatprep.subr.bf16.mxu0 0
        %1250 = vmatpush1.bf16.msra.mxu0 0
        %1251 = vmatprep.subr.bf16.mxu0 0
        %1252 = vmatpush1.bf16.msra.mxu0 0
        %1253 = vmatprep.subr.bf16.mxu0 0
        %1254 = vmatpush1.bf16.msra.mxu0 0
        %1255 = vmatprep.subr.bf16.mxu0 0
        %1256 = vmatpush1.bf16.msra.mxu0 0
        %1257 = vmatprep.subr.bf16.mxu0 0
        %1258 = vmatpush1.bf16.msra.mxu0 0
        %1259 = vmatprep.subr.bf16.mxu0 0
        %1260 = vmatpush1.bf16.msra.mxu0 0
        %1261 = vmatprep.mubr.bf16.mxu0 0
        %1262 = vmatmul.mubr.bf16.gmra.mrb[0].mxu0 %v1179
        %v1263 = vpop.f32.mrb[0].mxu0
        %v1264 = vadd.f32 0.0, %v1263
        %v1265 = vpop.f32.mrb[0].mxu0
        %v1266 = vpop.f32.mrb[0].mxu0
        %v1267 = vadd.f32 0.0, %v1266
        %v1268 = vpop.f32.mrb[0].mxu0
        %1269 = vdwg.mxu0
        %v1270 = vadd.f32 %v1149, %v1264
        %v1271 = vadd.f32 %v1152, %v1267
        %v1272 = vmul.f32 %v842, %v1270
        %v1273 = vmul.f32 %v843, %v1271
        %v1274 = vld [vmem:[%s665] sm:$0xff]
        %v1275 = vld [vmem:[%s665 + $0x8] sm:$0xff]
        %v1276 = vld [vmem:[%s674] sm:$0xff]
        %v1277 = vld [vmem:[%s674 + $0x8] sm:$0xff]
        %v1278 = vld [vmem:[%s683] sm:$0xff]
        %v1279 = vld [vmem:[%s683 + $0x8] sm:$0xff]
        %v1280 = vld [vmem:[%s14] sm:$0x1]
        %v1281 = vmul.f32 %v1272, %v1276
        %v1282 = vmul.f32 %v1273, %v1277
        %v1284 = vlaneseq
        %v1285 = vshrl.u32 %v1284, 7
        %v1286 = vsub.s32 0, %v1285
        %v1287 = vrot.slane %v1280, %v1286
        %v1289 = vmul.f32 %v1281, %v1287
        %v1290 = vmul.f32 %v1282, %v1287
        %vm1291 = vcmp.ge.f32.partialorder %v1278, 0.0
        %vm1292 = vcmp.ge.f32.partialorder %v1279, 0.0
        %v1293 = vsel %vm1291, 1.0, -1.0
        %v1294 = vsel %vm1292, 1.0, -1.0
        %v1295 = vmul.f32 %v1293, 0.01
        %v1296 = vmul.f32 %v1294, 0.01
        %v1297 = vadd.f32 %v1278, %v1295
        %v1298 = vadd.f32 %v1279, %v1296
        %vm1299 = vcmp.ge.f32.partialorder %v1276, 0.0
        %vm1300 = vcmp.ge.f32.partialorder %v1277, 0.0
        %v1301 = vsel %vm1299, 1.0, -1.0
        %v1302 = vsel %vm1300, 1.0, -1.0
        %v1303 = vmul.f32 %v1301, 0.01
        %v1304 = vmul.f32 %v1302, 0.01
        %v1305 = vadd.f32 %v1276, %v1303
        %v1306 = vadd.f32 %v1277, %v1304
        %v1307 = vmul.f32 %v1297, %v1305
        %v1308 = vmul.f32 %v1298, %v1306
        %v1309 = vrcp.pop %v1307
        %v1310 = vmul.f32 %v1289, %v1309
        %v1311 = vrcp.pop %v1308
        %v1312 = vmul.f32 %v1290, %v1311
        %v1313 = vpack.c.bf16 %v1312, %v1310
        %v1315 = vunpack.c.l.b16 %v1313
        %v1316 = vunpack.c.h.b16 %v1313
        %v1317 = vpack.c.b16 %v1315, %v1315
        %v1318 = vpack.c.b16 %v1316, %v1316
        %v1320 = vshrl.u32 %v1317, 16
        %v1322 = vrot.slane %v1320, 7
        %v1323 = vshll.u32 %v1317, 16
        %v1325 = vor.u32 %v1322, %v1323
        %v1326 = vrot.slane %v1322, 4
        %v1328 = vshrl.u32 %v1318, 16
        %v1330 = vrot.slane %v1328, 7
        %v1331 = vshll.u32 %v1318, 16
        %v1333 = vor.u32 %v1330, %v1331
        %v1334 = vsel %vm888, %v1326, %v1333
        %v1335 = vrot.slane %v1330, 4
        %v1339 = vsel %vm910, %v1325, %v918
        %1340 = vst [vmem:[#allocation2] sm:$0xf] %v1339
        %1341 = vst [vmem:[#allocation2 + $0x4] sm:$0xf] %v1334
        %v1342 = vld [vmem:[#allocation2 + $0x8] sm:$0x1]
        %v1343 = vsel %vm831, %v1335, %v1342
        %1344 = vst [vmem:[#allocation2 + $0x8] sm:$0x1] %v1343
        %v1345 = vld [vmem:[#allocation2] sm:$0xf]
        %v1346 = vld [vmem:[#allocation2 + $0x4] sm:$0xf]
        %v1347 = vld [vmem:[#allocation14] sm:$0xf]
        %v1348 = vld [vmem:[#allocation14 + $0x4] sm:$0xf]
        %v1349 = vld [vmem:[#allocation14 + $0x8] sm:$0xf]
        %v1350 = vld [vmem:[#allocation14 + $0xc] sm:$0xf]
        %v1351 = vld [vmem:[#allocation14 + $0x10] sm:$0xf]
        %v1352 = vld [vmem:[#allocation14 + $0x14] sm:$0xf]
        %v1353 = vld [vmem:[#allocation14 + $0x18] sm:$0xf]
        %v1354 = vld [vmem:[#allocation14 + $0x1c] sm:$0xf]
        %v1355 = vld [vmem:[#allocation14 + $0x20] sm:$0xf]
        %v1356 = vld [vmem:[#allocation14 + $0x24] sm:$0xf]
        %v1357 = vld [vmem:[#allocation14 + $0x28] sm:$0xf]
        %v1358 = vld [vmem:[#allocation14 + $0x2c] sm:$0xf]
        %v1359 = vld [vmem:[#allocation14 + $0x30] sm:$0xf]
        %v1360 = vld [vmem:[#allocation14 + $0x34] sm:$0xf]
        %v1361 = vld [vmem:[#allocation14 + $0x38] sm:$0xf]
        %v1362 = vld [vmem:[#allocation14 + $0x3c] sm:$0xf]
        %v1363 = vld [vmem:[#allocation2 + $0x8] sm:$0x1]
        %s1364 = scalar_lea.vmem [#allocation14], 64
        %v1365 = vld [vmem:[%s1364] sm:$0xf]
        %v1366 = vld [vmem:[%s1364 + $0x4] sm:$0xf]
        %v1367 = vld [vmem:[%s1364 + $0x8] sm:$0xf]
        %v1368 = vld [vmem:[%s1364 + $0xc] sm:$0xf]
        %v1369 = vld [vmem:[%s1364 + $0x10] sm:$0xf]
        %v1370 = vld [vmem:[%s1364 + $0x14] sm:$0xf]
        %v1371 = vld [vmem:[%s1364 + $0x18] sm:$0xf]
        %v1372 = vld [vmem:[%s1364 + $0x1c] sm:$0xf]
        %v1373 = vld [vmem:[%s1364 + $0x20] sm:$0xf]
        %v1374 = vld [vmem:[%s1364 + $0x24] sm:$0xf]
        %v1375 = vld [vmem:[%s1364 + $0x28] sm:$0xf]
        %v1376 = vld [vmem:[%s1364 + $0x2c] sm:$0xf]
        %v1377 = vld [vmem:[%s1364 + $0x30] sm:$0xf]
        %v1378 = vld [vmem:[%s1364 + $0x34] sm:$0xf]
        %v1379 = vld [vmem:[%s1364 + $0x38] sm:$0xf]
        %v1380 = vld [vmem:[%s1364 + $0x3c] sm:$0xf]
        %v1384 = vunpack.c.l.b16 %v1345
        %v1385 = vunpack.c.l.b16 %v1346
        %v1386 = vunpack.c.l.b16 %v1363
        %v1387 = vpack.c.b16 %v1385, %v1384
        %v1388 = vpack.c.b16 %v1386, %v1386
        %v1390 = vshrl.u32 %v1387, 16
        %v1392 = vshll.u32 %v1387, 16
        %v1394 = vrot.slane %v1392, 1
        %v1395 = vor.u32 %v1390, %v1394
        %v1397 = vshll.u32 %v1388, 16
        %v1399 = vrot.slane %v1397, 1
        %v1400 = vsel %vm962, %v1395, %v1399
        %v1418 = vunpack.c.l.b16 %v1365
        %v1419 = vunpack.c.l.b16 %v1366
        %v1420 = vunpack.c.l.b16 %v1367
        %v1421 = vunpack.c.l.b16 %v1368
        %v1422 = vunpack.c.l.b16 %v1369
        %v1423 = vunpack.c.l.b16 %v1370
        %v1424 = vunpack.c.l.b16 %v1371
        %v1425 = vunpack.c.l.b16 %v1372
        %v1426 = vunpack.c.l.b16 %v1373
        %v1427 = vunpack.c.l.b16 %v1374
        %v1428 = vunpack.c.l.b16 %v1375
        %v1429 = vunpack.c.l.b16 %v1376
        %v1430 = vunpack.c.l.b16 %v1377
        %v1431 = vunpack.c.l.b16 %v1378
        %v1432 = vunpack.c.l.b16 %v1379
        %v1433 = vunpack.c.l.b16 %v1380
        %v1434 = vpack.c.b16 %v1419, %v1418
        %v1435 = vpack.c.b16 %v1421, %v1420
        %v1436 = vpack.c.b16 %v1423, %v1422
        %v1437 = vpack.c.b16 %v1425, %v1424
        %v1438 = vpack.c.b16 %v1427, %v1426
        %v1439 = vpack.c.b16 %v1429, %v1428
        %v1440 = vpack.c.b16 %v1431, %v1430
        %v1441 = vpack.c.b16 %v1433, %v1432
        %1450 = vmatprep.subr.bf16.mxu0 0
        %1451 = vmatpush1.bf16.msra.mxu0 %v1434
        %1452 = vmatprep.subr.bf16.mxu0 0
        %1453 = vmatpush1.bf16.msra.mxu0 %v1435
        %1454 = vmatprep.subr.bf16.mxu0 0
        %1455 = vmatpush1.bf16.msra.mxu0 %v1436
        %1456 = vmatprep.subr.bf16.mxu0 0
        %1457 = vmatpush1.bf16.msra.mxu0 %v1437
        %1458 = vmatprep.subr.bf16.mxu0 0
        %1459 = vmatpush1.bf16.msra.mxu0 %v1438
        %1460 = vmatprep.subr.bf16.mxu0 0
        %1461 = vmatpush1.bf16.msra.mxu0 %v1439
        %1462 = vmatprep.subr.bf16.mxu0 0
        %1463 = vmatpush1.bf16.msra.mxu0 %v1440
        %1464 = vmatprep.subr.bf16.mxu0 0
        %1465 = vmatpush1.bf16.msra.mxu0 %v1441
        %1466 = vmatprep.subr.bf16.mxu0 0
        %1467 = vmatpush1.bf16.msra.mxu0 0
        %1468 = vmatprep.subr.bf16.mxu0 0
        %1469 = vmatpush1.bf16.msra.mxu0 0
        %1470 = vmatprep.subr.bf16.mxu0 0
        %1471 = vmatpush1.bf16.msra.mxu0 0
        %1472 = vmatprep.subr.bf16.mxu0 0
        %1473 = vmatpush1.bf16.msra.mxu0 0
        %1474 = vmatprep.subr.bf16.mxu0 0
        %1475 = vmatpush1.bf16.msra.mxu0 0
        %1476 = vmatprep.subr.bf16.mxu0 0
        %1477 = vmatpush1.bf16.msra.mxu0 0
        %1478 = vmatprep.subr.bf16.mxu0 0
        %1479 = vmatpush1.bf16.msra.mxu0 0
        %1480 = vmatprep.subr.bf16.mxu0 0
        %1481 = vmatpush1.bf16.msra.mxu0 0
        %1482 = vmatprep.mubr.bf16.mxu0 0
        %1483 = vmatmul.mubr.bf16.gmra.mrb[0].mxu0 %v1400
        %v1484 = vpop.f32.mrb[0].mxu0
        %v1485 = vadd.f32 0.0, %v1484
        %v1486 = vpop.f32.mrb[0].mxu0
        %v1487 = vpop.f32.mrb[0].mxu0
        %v1488 = vadd.f32 0.0, %v1487
        %v1489 = vpop.f32.mrb[0].mxu0
        %1490 = vdwg.mxu0
        %v1508 = vunpack.c.l.b16 %v1347
        %v1509 = vunpack.c.l.b16 %v1348
        %v1510 = vunpack.c.l.b16 %v1349
        %v1511 = vunpack.c.l.b16 %v1350
        %v1512 = vunpack.c.l.b16 %v1351
        %v1513 = vunpack.c.l.b16 %v1352
        %v1514 = vunpack.c.l.b16 %v1353
        %v1515 = vunpack.c.l.b16 %v1354
        %v1516 = vunpack.c.l.b16 %v1355
        %v1517 = vunpack.c.l.b16 %v1356
        %v1518 = vunpack.c.l.b16 %v1357
        %v1519 = vunpack.c.l.b16 %v1358
        %v1520 = vunpack.c.l.b16 %v1359
        %v1521 = vunpack.c.l.b16 %v1360
        %v1522 = vunpack.c.l.b16 %v1361
        %v1523 = vunpack.c.l.b16 %v1362
        %v1524 = vpack.c.b16 %v1509, %v1508
        %v1525 = vpack.c.b16 %v1511, %v1510
        %v1526 = vpack.c.b16 %v1513, %v1512
        %v1527 = vpack.c.b16 %v1515, %v1514
        %v1528 = vpack.c.b16 %v1517, %v1516
        %v1529 = vpack.c.b16 %v1519, %v1518
        %v1530 = vpack.c.b16 %v1521, %v1520
        %v1531 = vpack.c.b16 %v1523, %v1522
        %1540 = vmatprep.subr.bf16.mxu0 0
        %1541 = vmatpush1.bf16.msra.mxu0 %v1524
        %1542 = vmatprep.subr.bf16.mxu0 0
        %1543 = vmatpush1.bf16.msra.mxu0 %v1525
        %1544 = vmatprep.subr.bf16.mxu0 0
        %1545 = vmatpush1.bf16.msra.mxu0 %v1526
        %1546 = vmatprep.subr.bf16.mxu0 0
        %1547 = vmatpush1.bf16.msra.mxu0 %v1527
        %1548 = vmatprep.subr.bf16.mxu0 0
        %1549 = vmatpush1.bf16.msra.mxu0 %v1528
        %1550 = vmatprep.subr.bf16.mxu0 0
        %1551 = vmatpush1.bf16.msra.mxu0 %v1529
        %1552 = vmatprep.subr.bf16.mxu0 0
        %1553 = vmatpush1.bf16.msra.mxu0 %v1530
        %1554 = vmatprep.subr.bf16.mxu0 0
        %1555 = vmatpush1.bf16.msra.mxu0 %v1531
        %1556 = vmatprep.subr.bf16.mxu0 0
        %1557 = vmatpush1.bf16.msra.mxu0 0
        %1558 = vmatprep.subr.bf16.mxu0 0
        %1559 = vmatpush1.bf16.msra.mxu0 0
        %1560 = vmatprep.subr.bf16.mxu0 0
        %1561 = vmatpush1.bf16.msra.mxu0 0
        %1562 = vmatprep.subr.bf16.mxu0 0
        %1563 = vmatpush1.bf16.msra.mxu0 0
        %1564 = vmatprep.subr.bf16.mxu0 0
        %1565 = vmatpush1.bf16.msra.mxu0 0
        %1566 = vmatprep.subr.bf16.mxu0 0
        %1567 = vmatpush1.bf16.msra.mxu0 0
        %1568 = vmatprep.subr.bf16.mxu0 0
        %1569 = vmatpush1.bf16.msra.mxu0 0
        %1570 = vmatprep.subr.bf16.mxu0 0
        %1571 = vmatpush1.bf16.msra.mxu0 0
        %1572 = vmatprep.mubr.bf16.mxu0 0
        %1573 = vmatmul.mubr.bf16.gmra.mrb[0].mxu0 %v1387
        %v1574 = vpop.f32.mrb[0].mxu0
        %v1575 = vadd.f32 %v1485, %v1574
        %v1576 = vpop.f32.mrb[0].mxu0
        %v1577 = vpop.f32.mrb[0].mxu0
        %v1578 = vadd.f32 %v1488, %v1577
        %v1579 = vpop.f32.mrb[0].mxu0
        %1580 = vdwg.mxu0
        %v1581 = vld [vmem:[#allocation2] sm:$0xe]
        %s1582 = scalar_lea.vmem [#allocation14], 128
        %v1583 = vld [vmem:[%s1582] sm:$0xf]
        %v1584 = vld [vmem:[%s1582 + $0x4] sm:$0xf]
        %v1585 = vld [vmem:[%s1582 + $0x8] sm:$0xf]
        %v1586 = vld [vmem:[%s1582 + $0xc] sm:$0xf]
        %v1587 = vld [vmem:[%s1582 + $0x10] sm:$0xf]
        %v1588 = vld [vmem:[%s1582 + $0x14] sm:$0xf]
        %v1589 = vld [vmem:[%s1582 + $0x18] sm:$0xf]
        %v1590 = vld [vmem:[%s1582 + $0x1c] sm:$0xf]
        %v1591 = vld [vmem:[%s1582 + $0x20] sm:$0xf]
        %v1592 = vld [vmem:[%s1582 + $0x24] sm:$0xf]
        %v1593 = vld [vmem:[%s1582 + $0x28] sm:$0xf]
        %v1594 = vld [vmem:[%s1582 + $0x2c] sm:$0xf]
        %v1595 = vld [vmem:[%s1582 + $0x30] sm:$0xf]
        %v1596 = vld [vmem:[%s1582 + $0x34] sm:$0xf]
        %v1597 = vld [vmem:[%s1582 + $0x38] sm:$0xf]
        %v1598 = vld [vmem:[%s1582 + $0x3c] sm:$0xf]
        %v1600 = vunpack.c.l.b16 %v1581
        %v1601 = vpack.c.b16 %v1385, %v1600
        %v1602 = vrot.slane %v1601, 1
        %v1603 = vrot.slane %v1388, 1
        %v1604 = vsel %vm1176, %v1602, %v1603
        %v1622 = vunpack.c.l.b16 %v1583
        %v1623 = vunpack.c.l.b16 %v1584
        %v1624 = vunpack.c.l.b16 %v1585
        %v1625 = vunpack.c.l.b16 %v1586
        %v1626 = vunpack.c.l.b16 %v1587
        %v1627 = vunpack.c.l.b16 %v1588
        %v1628 = vunpack.c.l.b16 %v1589
        %v1629 = vunpack.c.l.b16 %v1590
        %v1630 = vunpack.c.l.b16 %v1591
        %v1631 = vunpack.c.l.b16 %v1592
        %v1632 = vunpack.c.l.b16 %v1593
        %v1633 = vunpack.c.l.b16 %v1594
        %v1634 = vunpack.c.l.b16 %v1595
        %v1635 = vunpack.c.l.b16 %v1596
        %v1636 = vunpack.c.l.b16 %v1597
        %v1637 = vunpack.c.l.b16 %v1598
        %v1638 = vpack.c.b16 %v1623, %v1622
        %v1639 = vpack.c.b16 %v1625, %v1624
        %v1640 = vpack.c.b16 %v1627, %v1626
        %v1641 = vpack.c.b16 %v1629, %v1628
        %v1642 = vpack.c.b16 %v1631, %v1630
        %v1643 = vpack.c.b16 %v1633, %v1632
        %v1644 = vpack.c.b16 %v1635, %v1634
        %v1645 = vpack.c.b16 %v1637, %v1636
        %1654 = vmatprep.subr.bf16.mxu0 0
        %1655 = vmatpush1.bf16.msra.mxu0 %v1638
        %1656 = vmatprep.subr.bf16.mxu0 0
        %1657 = vmatpush1.bf16.msra.mxu0 %v1639
        %1658 = vmatprep.subr.bf16.mxu0 0
        %1659 = vmatpush1.bf16.msra.mxu0 %v1640
        %1660 = vmatprep.subr.bf16.mxu0 0
        %1661 = vmatpush1.bf16.msra.mxu0 %v1641
        %1662 = vmatprep.subr.bf16.mxu0 0
        %1663 = vmatpush1.bf16.msra.mxu0 %v1642
        %1664 = vmatprep.subr.bf16.mxu0 0
        %1665 = vmatpush1.bf16.msra.mxu0 %v1643
        %1666 = vmatprep.subr.bf16.mxu0 0
        %1667 = vmatpush1.bf16.msra.mxu0 %v1644
        %1668 = vmatprep.subr.bf16.mxu0 0
        %1669 = vmatpush1.bf16.msra.mxu0 %v1645
        %1670 = vmatprep.subr.bf16.mxu0 0
        %1671 = vmatpush1.bf16.msra.mxu0 0
        %1672 = vmatprep.subr.bf16.mxu0 0
        %1673 = vmatpush1.bf16.msra.mxu0 0
        %1674 = vmatprep.subr.bf16.mxu0 0
        %1675 = vmatpush1.bf16.msra.mxu0 0
        %1676 = vmatprep.subr.bf16.mxu0 0
        %1677 = vmatpush1.bf16.msra.mxu0 0
        %1678 = vmatprep.subr.bf16.mxu0 0
        %1679 = vmatpush1.bf16.msra.mxu0 0
        %1680 = vmatprep.subr.bf16.mxu0 0
        %1681 = vmatpush1.bf16.msra.mxu0 0
        %1682 = vmatprep.subr.bf16.mxu0 0
        %1683 = vmatpush1.bf16.msra.mxu0 0
        %1684 = vmatprep.subr.bf16.mxu0 0
        %1685 = vmatpush1.bf16.msra.mxu0 0
        %1686 = vmatprep.mubr.bf16.mxu0 0
        %1687 = vmatmul.mubr.bf16.gmra.mrb[0].mxu0 %v1604
        %v1688 = vpop.f32.mrb[0].mxu0
        %v1689 = vadd.f32 0.0, %v1688
        %v1690 = vpop.f32.mrb[0].mxu0
        %v1691 = vpop.f32.mrb[0].mxu0
        %v1692 = vadd.f32 0.0, %v1691
        %v1693 = vpop.f32.mrb[0].mxu0
        %1694 = vdwg.mxu0
        %v1695 = vadd.f32 %v1575, %v1689
        %v1696 = vadd.f32 %v1578, %v1692
        %v1697 = vmul.f32 %v1274, %v1695
        %v1698 = vmul.f32 %v1275, %v1696
        %v1699 = vld [vmem:[%s692] sm:$0xff]
        %v1700 = vld [vmem:[%s692 + $0x8] sm:$0xff]
        %v1701 = vld [vmem:[%s701] sm:$0xff]
        %v1702 = vld [vmem:[%s701 + $0x8] sm:$0xff]
        %v1703 = vld [vmem:[%s710] sm:$0xff]
        %v1704 = vld [vmem:[%s710 + $0x8] sm:$0xff]
        %v1705 = vld [vmem:[%s15] sm:$0x1]
        %v1706 = vmul.f32 %v1697, %v1701
        %v1707 = vmul.f32 %v1698, %v1702
        %v1709 = vlaneseq
        %v1710 = vshrl.u32 %v1709, 7
        %v1711 = vsub.s32 0, %v1710
        %v1712 = vrot.slane %v1705, %v1711
        %v1714 = vmul.f32 %v1706, %v1712
        %v1715 = vmul.f32 %v1707, %v1712
        %vm1716 = vcmp.ge.f32.partialorder %v1703, 0.0
        %vm1717 = vcmp.ge.f32.partialorder %v1704, 0.0
        %v1718 = vsel %vm1716, 1.0, -1.0
        %v1719 = vsel %vm1717, 1.0, -1.0
        %v1720 = vmul.f32 %v1718, 0.01
        %v1721 = vmul.f32 %v1719, 0.01
        %v1722 = vadd.f32 %v1703, %v1720
        %v1723 = vadd.f32 %v1704, %v1721
        %vm1724 = vcmp.ge.f32.partialorder %v1701, 0.0
        %vm1725 = vcmp.ge.f32.partialorder %v1702, 0.0
        %v1726 = vsel %vm1724, 1.0, -1.0
        %v1727 = vsel %vm1725, 1.0, -1.0
        %v1728 = vmul.f32 %v1726, 0.01
        %v1729 = vmul.f32 %v1727, 0.01
        %v1730 = vadd.f32 %v1701, %v1728
        %v1731 = vadd.f32 %v1702, %v1729
        %v1732 = vmul.f32 %v1722, %v1730
        %v1733 = vmul.f32 %v1723, %v1731
        %v1734 = vrcp.pop %v1732
        %v1735 = vmul.f32 %v1714, %v1734
        %v1736 = vrcp.pop %v1733
        %v1737 = vmul.f32 %v1715, %v1736
        %v1738 = vpack.c.bf16 %v1737, %v1735
        %v1740 = vunpack.c.l.b16 %v1738
        %v1741 = vunpack.c.h.b16 %v1738
        %v1742 = vpack.c.b16 %v1740, %v1740
        %v1743 = vpack.c.b16 %v1741, %v1741
        %v1745 = vshrl.u32 %v1742, 16
        %v1747 = vrot.slane %v1745, 7
        %v1748 = vshll.u32 %v1742, 16
        %v1750 = vor.u32 %v1747, %v1748
        %v1751 = vrot.slane %v1747, 4
        %v1753 = vshrl.u32 %v1743, 16
        %v1755 = vrot.slane %v1753, 7
        %v1756 = vshll.u32 %v1743, 16
        %v1758 = vor.u32 %v1755, %v1756
        %v1759 = vsel %vm888, %v1751, %v1758
        %v1760 = vrot.slane %v1755, 4
        %v1764 = vsel %vm910, %v1750, %v1345
        %1765 = vst [vmem:[#allocation2] sm:$0xf] %v1764
        %1766 = vst [vmem:[#allocation2 + $0x4] sm:$0xf] %v1759
        %v1767 = vld [vmem:[#allocation2 + $0x8] sm:$0x1]
        %v1768 = vsel %vm831, %v1760, %v1767
        %1769 = vst [vmem:[#allocation2 + $0x8] sm:$0x1] %v1768
        %v1770 = vld [vmem:[#allocation2] sm:$0xf]
        %v1771 = vld [vmem:[#allocation2 + $0x4] sm:$0xf]
        %v1772 = vld [vmem:[%s12] sm:$0xf]
        %v1773 = vld [vmem:[%s12 + $0x4] sm:$0xf]
        %v1774 = vld [vmem:[%s12 + $0x8] sm:$0xf]
        %v1775 = vld [vmem:[%s12 + $0xc] sm:$0xf]
        %v1776 = vld [vmem:[%s12 + $0x10] sm:$0xf]
        %v1777 = vld [vmem:[%s12 + $0x14] sm:$0xf]
        %v1778 = vld [vmem:[%s12 + $0x18] sm:$0xf]
        %v1779 = vld [vmem:[%s12 + $0x1c] sm:$0xf]
        %v1780 = vld [vmem:[%s12 + $0x20] sm:$0xf]
        %v1781 = vld [vmem:[%s12 + $0x24] sm:$0xf]
        %v1782 = vld [vmem:[%s12 + $0x28] sm:$0xf]
        %v1783 = vld [vmem:[%s12 + $0x2c] sm:$0xf]
        %v1784 = vld [vmem:[%s12 + $0x30] sm:$0xf]
        %v1785 = vld [vmem:[%s12 + $0x34] sm:$0xf]
        %v1786 = vld [vmem:[%s12 + $0x38] sm:$0xf]
        %v1787 = vld [vmem:[%s12 + $0x3c] sm:$0xf]
        %v1788 = vld [vmem:[#allocation2 + $0x8] sm:$0x1]
        %s1789 = scalar_lea.vmem %s12, 64
        %v1790 = vld [vmem:[%s1789] sm:$0xf]
        %v1791 = vld [vmem:[%s1789 + $0x4] sm:$0xf]
        %v1792 = vld [vmem:[%s1789 + $0x8] sm:$0xf]
        %v1793 = vld [vmem:[%s1789 + $0xc] sm:$0xf]
        %v1794 = vld [vmem:[%s1789 + $0x10] sm:$0xf]
        %v1795 = vld [vmem:[%s1789 + $0x14] sm:$0xf]
        %v1796 = vld [vmem:[%s1789 + $0x18] sm:$0xf]
        %v1797 = vld [vmem:[%s1789 + $0x1c] sm:$0xf]
        %v1798 = vld [vmem:[%s1789 + $0x20] sm:$0xf]
        %v1799 = vld [vmem:[%s1789 + $0x24] sm:$0xf]
        %v1800 = vld [vmem:[%s1789 + $0x28] sm:$0xf]
        %v1801 = vld [vmem:[%s1789 + $0x2c] sm:$0xf]
        %v1802 = vld [vmem:[%s1789 + $0x30] sm:$0xf]
        %v1803 = vld [vmem:[%s1789 + $0x34] sm:$0xf]
        %v1804 = vld [vmem:[%s1789 + $0x38] sm:$0xf]
        %v1805 = vld [vmem:[%s1789 + $0x3c] sm:$0xf]
        %v1809 = vunpack.c.l.b16 %v1770
        %v1810 = vunpack.c.l.b16 %v1771
        %v1811 = vunpack.c.l.b16 %v1788
        %v1812 = vpack.c.b16 %v1810, %v1809
        %v1813 = vpack.c.b16 %v1811, %v1811
        %v1815 = vshrl.u32 %v1812, 16
        %v1817 = vshll.u32 %v1812, 16
        %v1819 = vrot.slane %v1817, 1
        %v1820 = vor.u32 %v1815, %v1819
        %v1822 = vshll.u32 %v1813, 16
        %v1824 = vrot.slane %v1822, 1
        %v1825 = vsel %vm962, %v1820, %v1824
        %v1843 = vunpack.c.l.b16 %v1790
        %v1844 = vunpack.c.l.b16 %v1791
        %v1845 = vunpack.c.l.b16 %v1792
        %v1846 = vunpack.c.l.b16 %v1793
        %v1847 = vunpack.c.l.b16 %v1794
        %v1848 = vunpack.c.l.b16 %v1795
        %v1849 = vunpack.c.l.b16 %v1796
        %v1850 = vunpack.c.l.b16 %v1797
        %v1851 = vunpack.c.l.b16 %v1798
        %v1852 = vunpack.c.l.b16 %v1799
        %v1853 = vunpack.c.l.b16 %v1800
        %v1854 = vunpack.c.l.b16 %v1801
        %v1855 = vunpack.c.l.b16 %v1802
        %v1856 = vunpack.c.l.b16 %v1803
        %v1857 = vunpack.c.l.b16 %v1804
        %v1858 = vunpack.c.l.b16 %v1805
        %v1859 = vpack.c.b16 %v1844, %v1843
        %v1860 = vpack.c.b16 %v1846, %v1845
        %v1861 = vpack.c.b16 %v1848, %v1847
        %v1862 = vpack.c.b16 %v1850, %v1849
        %v1863 = vpack.c.b16 %v1852, %v1851
        %v1864 = vpack.c.b16 %v1854, %v1853
        %v1865 = vpack.c.b16 %v1856, %v1855
        %v1866 = vpack.c.b16 %v1858, %v1857
        %1875 = vmatprep.subr.bf16.mxu0 0
        %1876 = vmatpush1.bf16.msra.mxu0 %v1859
        %1877 = vmatprep.subr.bf16.mxu0 0
        %1878 = vmatpush1.bf16.msra.mxu0 %v1860
        %1879 = vmatprep.subr.bf16.mxu0 0
        %1880 = vmatpush1.bf16.msra.mxu0 %v1861
        %1881 = vmatprep.subr.bf16.mxu0 0
        %1882 = vmatpush1.bf16.msra.mxu0 %v1862
        %1883 = vmatprep.subr.bf16.mxu0 0
        %1884 = vmatpush1.bf16.msra.mxu0 %v1863
        %1885 = vmatprep.subr.bf16.mxu0 0
        %1886 = vmatpush1.bf16.msra.mxu0 %v1864
        %1887 = vmatprep.subr.bf16.mxu0 0
        %1888 = vmatpush1.bf16.msra.mxu0 %v1865
        %1889 = vmatprep.subr.bf16.mxu0 0
        %1890 = vmatpush1.bf16.msra.mxu0 %v1866
        %1891 = vmatprep.subr.bf16.mxu0 0
        %1892 = vmatpush1.bf16.msra.mxu0 0
        %1893 = vmatprep.subr.bf16.mxu0 0
        %1894 = vmatpush1.bf16.msra.mxu0 0
        %1895 = vmatprep.subr.bf16.mxu0 0
        %1896 = vmatpush1.bf16.msra.mxu0 0
        %1897 = vmatprep.subr.bf16.mxu0 0
        %1898 = vmatpush1.bf16.msra.mxu0 0
        %1899 = vmatprep.subr.bf16.mxu0 0
        %1900 = vmatpush1.bf16.msra.mxu0 0
        %1901 = vmatprep.subr.bf16.mxu0 0
        %1902 = vmatpush1.bf16.msra.mxu0 0
        %1903 = vmatprep.subr.bf16.mxu0 0
        %1904 = vmatpush1.bf16.msra.mxu0 0
        %1905 = vmatprep.subr.bf16.mxu0 0
        %1906 = vmatpush1.bf16.msra.mxu0 0
        %1907 = vmatprep.mubr.bf16.mxu0 0
        %1908 = vmatmul.mubr.bf16.gmra.mrb[0].mxu0 %v1825
        %v1909 = vpop.f32.mrb[0].mxu0
        %v1910 = vadd.f32 0.0, %v1909
        %v1911 = vpop.f32.mrb[0].mxu0
        %v1912 = vpop.f32.mrb[0].mxu0
        %v1913 = vadd.f32 0.0, %v1912
        %v1914 = vpop.f32.mrb[0].mxu0
        %1915 = vdwg.mxu0
        %v1933 = vunpack.c.l.b16 %v1772
        %v1934 = vunpack.c.l.b16 %v1773
        %v1935 = vunpack.c.l.b16 %v1774
        %v1936 = vunpack.c.l.b16 %v1775
        %v1937 = vunpack.c.l.b16 %v1776
        %v1938 = vunpack.c.l.b16 %v1777
        %v1939 = vunpack.c.l.b16 %v1778
        %v1940 = vunpack.c.l.b16 %v1779
        %v1941 = vunpack.c.l.b16 %v1780
        %v1942 = vunpack.c.l.b16 %v1781
        %v1943 = vunpack.c.l.b16 %v1782
        %v1944 = vunpack.c.l.b16 %v1783
        %v1945 = vunpack.c.l.b16 %v1784
        %v1946 = vunpack.c.l.b16 %v1785
        %v1947 = vunpack.c.l.b16 %v1786
        %v1948 = vunpack.c.l.b16 %v1787
        %v1949 = vpack.c.b16 %v1934, %v1933
        %v1950 = vpack.c.b16 %v1936, %v1935
        %v1951 = vpack.c.b16 %v1938, %v1937
        %v1952 = vpack.c.b16 %v1940, %v1939
        %v1953 = vpack.c.b16 %v1942, %v1941
        %v1954 = vpack.c.b16 %v1944, %v1943
        %v1955 = vpack.c.b16 %v1946, %v1945
        %v1956 = vpack.c.b16 %v1948, %v1947
        %1965 = vmatprep.subr.bf16.mxu0 0
        %1966 = vmatpush1.bf16.msra.mxu0 %v1949
        %1967 = vmatprep.subr.bf16.mxu0 0
        %1968 = vmatpush1.bf16.msra.mxu0 %v1950
        %1969 = vmatprep.subr.bf16.mxu0 0
        %1970 = vmatpush1.bf16.msra.mxu0 %v1951
        %1971 = vmatprep.subr.bf16.mxu0 0
        %1972 = vmatpush1.bf16.msra.mxu0 %v1952
        %1973 = vmatprep.subr.bf16.mxu0 0
        %1974 = vmatpush1.bf16.msra.mxu0 %v1953
        %1975 = vmatprep.subr.bf16.mxu0 0
        %1976 = vmatpush1.bf16.msra.mxu0 %v1954
        %1977 = vmatprep.subr.bf16.mxu0 0
        %1978 = vmatpush1.bf16.msra.mxu0 %v1955
        %1979 = vmatprep.subr.bf16.mxu0 0
        %1980 = vmatpush1.bf16.msra.mxu0 %v1956
        %1981 = vmatprep.subr.bf16.mxu0 0
        %1982 = vmatpush1.bf16.msra.mxu0 0
        %1983 = vmatprep.subr.bf16.mxu0 0
        %1984 = vmatpush1.bf16.msra.mxu0 0
        %1985 = vmatprep.subr.bf16.mxu0 0
        %1986 = vmatpush1.bf16.msra.mxu0 0
        %1987 = vmatprep.subr.bf16.mxu0 0
        %1988 = vmatpush1.bf16.msra.mxu0 0
        %1989 = vmatprep.subr.bf16.mxu0 0
        %1990 = vmatpush1.bf16.msra.mxu0 0
        %1991 = vmatprep.subr.bf16.mxu0 0
        %1992 = vmatpush1.bf16.msra.mxu0 0
        %1993 = vmatprep.subr.bf16.mxu0 0
        %1994 = vmatpush1.bf16.msra.mxu0 0
        %1995 = vmatprep.subr.bf16.mxu0 0
        %1996 = vmatpush1.bf16.msra.mxu0 0
        %1997 = vmatprep.mubr.bf16.mxu0 0
        %1998 = vmatmul.mubr.bf16.gmra.mrb[0].mxu0 %v1812
        %v1999 = vpop.f32.mrb[0].mxu0
        %v2000 = vadd.f32 %v1910, %v1999
        %v2001 = vpop.f32.mrb[0].mxu0
        %v2002 = vpop.f32.mrb[0].mxu0
        %v2003 = vadd.f32 %v1913, %v2002
        %v2004 = vpop.f32.mrb[0].mxu0
        %2005 = vdwg.mxu0
        %v2006 = vld [vmem:[#allocation2] sm:$0xe]
        %s2007 = scalar_lea.vmem %s12, 128
        %v2008 = vld [vmem:[%s2007] sm:$0xf]
        %v2009 = vld [vmem:[%s2007 + $0x4] sm:$0xf]
        %v2010 = vld [vmem:[%s2007 + $0x8] sm:$0xf]
        %v2011 = vld [vmem:[%s2007 + $0xc] sm:$0xf]
        %v2012 = vld [vmem:[%s2007 + $0x10] sm:$0xf]
        %v2013 = vld [vmem:[%s2007 + $0x14] sm:$0xf]
        %v2014 = vld [vmem:[%s2007 + $0x18] sm:$0xf]
        %v2015 = vld [vmem:[%s2007 + $0x1c] sm:$0xf]
        %v2016 = vld [vmem:[%s2007 + $0x20] sm:$0xf]
        %v2017 = vld [vmem:[%s2007 + $0x24] sm:$0xf]
        %v2018 = vld [vmem:[%s2007 + $0x28] sm:$0xf]
        %v2019 = vld [vmem:[%s2007 + $0x2c] sm:$0xf]
        %v2020 = vld [vmem:[%s2007 + $0x30] sm:$0xf]
        %v2021 = vld [vmem:[%s2007 + $0x34] sm:$0xf]
        %v2022 = vld [vmem:[%s2007 + $0x38] sm:$0xf]
        %v2023 = vld [vmem:[%s2007 + $0x3c] sm:$0xf]
        %v2025 = vunpack.c.l.b16 %v2006
        %v2026 = vpack.c.b16 %v1810, %v2025
        %v2027 = vrot.slane %v2026, 1
        %v2028 = vrot.slane %v1813, 1
        %v2029 = vsel %vm1176, %v2027, %v2028
        %v2047 = vunpack.c.l.b16 %v2008
        %v2048 = vunpack.c.l.b16 %v2009
        %v2049 = vunpack.c.l.b16 %v2010
        %v2050 = vunpack.c.l.b16 %v2011
        %v2051 = vunpack.c.l.b16 %v2012
        %v2052 = vunpack.c.l.b16 %v2013
        %v2053 = vunpack.c.l.b16 %v2014
        %v2054 = vunpack.c.l.b16 %v2015
        %v2055 = vunpack.c.l.b16 %v2016
        %v2056 = vunpack.c.l.b16 %v2017
        %v2057 = vunpack.c.l.b16 %v2018
        %v2058 = vunpack.c.l.b16 %v2019
        %v2059 = vunpack.c.l.b16 %v2020
        %v2060 = vunpack.c.l.b16 %v2021
        %v2061 = vunpack.c.l.b16 %v2022
        %v2062 = vunpack.c.l.b16 %v2023
        %v2063 = vpack.c.b16 %v2048, %v2047
        %v2064 = vpack.c.b16 %v2050, %v2049
        %v2065 = vpack.c.b16 %v2052, %v2051
        %v2066 = vpack.c.b16 %v2054, %v2053
        %v2067 = vpack.c.b16 %v2056, %v2055
        %v2068 = vpack.c.b16 %v2058, %v2057
        %v2069 = vpack.c.b16 %v2060, %v2059
        %v2070 = vpack.c.b16 %v2062, %v2061
        %2079 = vmatprep.subr.bf16.mxu0 0
        %2080 = vmatpush1.bf16.msra.mxu0 %v2063
        %2081 = vmatprep.subr.bf16.mxu0 0
        %2082 = vmatpush1.bf16.msra.mxu0 %v2064
        %2083 = vmatprep.subr.bf16.mxu0 0
        %2084 = vmatpush1.bf16.msra.mxu0 %v2065
        %2085 = vmatprep.subr.bf16.mxu0 0
        %2086 = vmatpush1.bf16.msra.mxu0 %v2066
        %2087 = vmatprep.subr.bf16.mxu0 0
        %2088 = vmatpush1.bf16.msra.mxu0 %v2067
        %2089 = vmatprep.subr.bf16.mxu0 0
        %2090 = vmatpush1.bf16.msra.mxu0 %v2068
        %2091 = vmatprep.subr.bf16.mxu0 0
        %2092 = vmatpush1.bf16.msra.mxu0 %v2069
        %2093 = vmatprep.subr.bf16.mxu0 0
        %2094 = vmatpush1.bf16.msra.mxu0 %v2070
        %2095 = vmatprep.subr.bf16.mxu0 0
        %2096 = vmatpush1.bf16.msra.mxu0 0
        %2097 = vmatprep.subr.bf16.mxu0 0
        %2098 = vmatpush1.bf16.msra.mxu0 0
        %2099 = vmatprep.subr.bf16.mxu0 0
        %2100 = vmatpush1.bf16.msra.mxu0 0
        %2101 = vmatprep.subr.bf16.mxu0 0
        %2102 = vmatpush1.bf16.msra.mxu0 0
        %2103 = vmatprep.subr.bf16.mxu0 0
        %2104 = vmatpush1.bf16.msra.mxu0 0
        %2105 = vmatprep.subr.bf16.mxu0 0
        %2106 = vmatpush1.bf16.msra.mxu0 0
        %2107 = vmatprep.subr.bf16.mxu0 0
        %2108 = vmatpush1.bf16.msra.mxu0 0
        %2109 = vmatprep.subr.bf16.mxu0 0
        %2110 = vmatpush1.bf16.msra.mxu0 0
        %2111 = vmatprep.mubr.bf16.mxu0 0
        %2112 = vmatmul.mubr.bf16.gmra.mrb[0].mxu0 %v2029
        %v2113 = vpop.f32.mrb[0].mxu0
        %v2114 = vadd.f32 0.0, %v2113
        %v2115 = vpop.f32.mrb[0].mxu0
        %v2116 = vpop.f32.mrb[0].mxu0
        %v2117 = vadd.f32 0.0, %v2116
        %v2118 = vpop.f32.mrb[0].mxu0
        %2119 = vdwg.mxu0
        %v2120 = vadd.f32 %v2000, %v2114
        %v2121 = vadd.f32 %v2003, %v2117
        %v2122 = vmul.f32 %v1699, %v2120
        %v2123 = vmul.f32 %v1700, %v2121
        %vm2124 = vcmask 523264
        %2125 = vst.msk [vmem:[%s807] sm:$0xff] %vm2124, %v2122
        %2126 = vst.msk [vmem:[%s807 + $0x8] sm:$0xff] %vm2124, %v2123
        %s2127 = sand.u32 %s436, 1
        %s2128 = scalar_lea.sflag [#allocation5], %s2127
        %s2129 = sand.u32 %s436, 1
        %s2130 = smul.addr %s2129, 16
        %s2131 = scalar_lea.vmem [#allocation15], %s2130
        // Predicated region
        $region113: #{tpu_custom_call.1} parent=83 // pred_check
          %p2132 = pneg %p446
        $region114: #{tpu_custom_call.1} parent=83 // pred_check_branch
          %2134 = sbr.rel (%p2132) target = $region116
        $region115: #{tpu_custom_call.1} parent=83 // pred_region
          %s2136 = ssub.s32 256, 256
          %2137 = vsyncadd %s2128, %s2136
          %s2138 = smul.addr %s42, 2
          %s2139 = smul.addr %s2138, 128
          %s2140 = scalar_lea.hbm %s16, %s2139
          %s2141 = sshll.u32 %s2131, 4
          %s2142 = int_to_ptr.vmem [resolvable:$true] %s2141
          %2147 = dma.vmem_to_hbm [thread:$0]  %s2142, 256, %s2140, %s2128, 128, 128, 8
        $region116: #{tpu_custom_call.1} parent=83 // pred_fallthru
          _
      $region84: #{tpu_custom_call.1} parent=5 // pred_fallthru
        _
      %p2148 = scmp.le.s32.totalorder 2, %s37
      // Predicated region
      $region117: #{tpu_custom_call.1} parent=5 // pred_check
        %p2149 = pneg %p2148
      $region118: #{tpu_custom_call.1} parent=5 // pred_check_branch
        %2151 = sbr.rel (%p2149) target = $region120
      $region119: #{tpu_custom_call.1} parent=5 // pred_region
        %s2152 = ssub.s32 %s37, 2
        // Predicated region
        $region121: #{tpu_custom_call.1} parent=119 // pred_check
          %p2153 = pneg %p452
        $region122: #{tpu_custom_call.1} parent=119 // pred_check_branch
          %2155 = sbr.rel (%p2153) target = $region124
        $region123: #{tpu_custom_call.1} parent=119 // pred_region
          %s2156 = sand.u32 %s437, 1
          %s2157 = scalar_lea.sflag [#allocation5], %s2156
          %s2158 = sand.u32 %s437, 1
          %s2159 = smul.addr %s2158, 16
          %s2160 = scalar_lea.vmem [#allocation15], %s2159
          %2161 = dma.done %s2157, 256
        $region124: #{tpu_custom_call.1} parent=119 // pred_fallthru
          _
      $region120: #{tpu_custom_call.1} parent=5 // pred_fallthru
        _
    $region6: #{tpu_custom_call.1} parent=1 // loop_footer
      %s41 = sadd.s32 1, %s37
    $region7: #{tpu_custom_call.1} parent=1 // loop_footer_branch
      %36 = sbr.rel target = $region3
    $region8: #{tpu_custom_call.1} parent=1 // loop_exit
      _
    %2162 = vsyncpa [#allocation4], 1
    %s2163 = scalar_lea.sflag [#allocation4], 1
    %2164 = vsyncpa %s2163, 1
    %2165 = vsyncpa [#allocation7], 1
    %s2166 = scalar_lea.sflag [#allocation7], 1
    %2167 = vsyncpa %s2166, 1
    %2168 = vsyncpa [#allocation10], 1
    %s2169 = scalar_lea.sflag [#allocation10], 1
    %2170 = vsyncpa %s2169, 1
    %2171 = vsyncpa [#allocation13], 1
    %s2172 = scalar_lea.sflag [#allocation13], 1
    %2173 = vsyncpa %s2172, 1
    %2174 = vsyncpa [#allocation5], 1
    %s2175 = scalar_lea.sflag [#allocation5], 1
    %2176 = vsyncpa %s2175, 1

</llo_original>
